<compile_context>
chip_gen: v5e
topology: v5e:2x2
jax: 0.10.0
libtpu: 0.0.40
codegen_flags: <defaults>
</compile_context>

<pallas_src>
import functools

import jax
import jax.numpy as jnp
from jax.experimental import pallas as pl
from jax.experimental.pallas import tpu as pltpu

# ----------------------------- config ---------------------------------------
BATCH = 2
SEQ = 8
HIDDEN = 32
NUM_HEADS = 4
HEAD_DIM = HIDDEN // NUM_HEADS
FF = 64
NUM_BLOCKS = 2
LN_EPS = 1e-5


# --------------------------- kernel body -------------------------------------
def _layer_norm(x, gamma, beta):
    mu = jnp.mean(x, axis=-1, keepdims=True)
    var = jnp.mean((x - mu) ** 2, axis=-1, keepdims=True)
    inv = jax.lax.rsqrt(var + LN_EPS)
    return (x - mu) * inv * gamma + beta


def encoder_stack_kernel(x_ref, bias_ref,
                         wqkvo_ref, bqkvo_ref, g1_ref, be1_ref,
                         w1_ref, b1_ref, w2_ref, b2_ref, g2_ref, be2_ref,
                         out_ref, *, num_blocks, num_heads):
    BS, H = x_ref.shape                       # (B*S, H)
    dh = H // num_heads

    bias = bias_ref[...]                      # (NH*BS, NH*BS) constant additive bias
    act = x_ref[...].astype(jnp.float32)      # (BS, H) activation, stays on-chip

    for l in range(num_blocks):               # static unroll over encoder blocks
        wqkvo = wqkvo_ref[l]                  # (H, 4H) lane-dense pack [Wq|Wk|Wv|Wo]
        bqkvo = bqkvo_ref[l]                  # (1, 4H)

        # ---- fused QKV(+O-filler) projection: one MXU matmul ----
        qkvo = jnp.dot(act, wqkvo, preferred_element_type=jnp.float32) + bqkvo

        # heads -> sublanes, ordering (head, batch, seq): (NH*BS, dh).
        # Slices the per-head column windows straight out of qkvo (no q/k/v
        # intermediates), one 4-operand concat per tensor.
        def hstack(base):
            return jnp.concatenate(
                [qkvo[:, base + h * dh: base + (h + 1) * dh]
                 for h in range(num_heads)], axis=0)

        q_s = hstack(0)           # Wq/bq pre-scaled by 1/sqrt(dh) at pack time
        k_s = hstack(H)
        v_s = hstack(2 * H)

        # ---- ONE score matmul for all (batch, head) pairs ----
        # The constant bias adds -1e9 to every cross-(batch,head) block and the
        # key-padding bias to masked key columns, so a single row softmax over
        # the (NH*BS, NH*BS) matrix reproduces per-head attention exactly.
        scores = jax.lax.dot_general(q_s, k_s, (((1,), (1,)), ((), ())),
                                     preferred_element_type=jnp.float32)
        scores = scores + bias
        m = jnp.max(scores, axis=-1, keepdims=True)
        e = jnp.exp(scores - m)
        p = e * pl.reciprocal(jnp.sum(e, axis=-1, keepdims=True), approx=True)
        ctx_s = jnp.dot(p, v_s, preferred_element_type=jnp.float32)   # (NH*BS, dh)

        # heads back to lanes: (BS, H), one concat
        ctx = jnp.concatenate(
            [ctx_s[h * BS:(h + 1) * BS, :] for h in range(num_heads)], axis=1)

        # output projection (Wo lives in the 4th quarter of the pack)
        attn = jnp.dot(ctx, wqkvo[:, 3 * H:],
                       preferred_element_type=jnp.float32) + bqkvo[:, 3 * H:]

        # ---- residual 1 + LayerNorm (post-LN, dropout identity in eval) ----
        y = _layer_norm(act + attn, g1_ref[l], be1_ref[l])

        # ---- feed forward ----
        h1 = jnp.maximum(
            jnp.dot(y, w1_ref[l], preferred_element_type=jnp.float32) + b1_ref[l],
            0.0)
        ffn = jnp.dot(h1, w2_ref[l], preferred_element_type=jnp.float32) + b2_ref[l]

        # ---- residual 2 + LayerNorm ----
        act = _layer_norm(y + ffn, g2_ref[l], be2_ref[l])

    out_ref[...] = act.astype(out_ref.dtype)


# --------------------------- wrapper -----------------------------------------
def pack_params(params_list):
    """Stack per-block params along a leading NUM_BLOCKS axis; pack QKVO into
    one lane-dense (H, 4H) weight; fold the 1/sqrt(head_dim) scale into Wq/bq."""
    scale = 1.0 / (HEAD_DIM ** 0.5)

    def stk(fn):
        return jnp.stack([fn(p) for p in params_list], axis=0)

    return dict(
        w_qkvo=stk(lambda p: jnp.concatenate(
            [p["wq"] * scale, p["wk"], p["wv"], p["wo"]], axis=1)),   # (NB, H, 4H)
        b_qkvo=stk(lambda p: jnp.concatenate(
            [p["bq"] * scale, p["bk"], p["bv"], p["bo"]], axis=1)),   # (NB, 1, 4H)
        g1=stk(lambda p: p["g1"]), be1=stk(lambda p: p["be1"]),
        w1=stk(lambda p: p["w1"]), b1=stk(lambda p: p["b1"]),
        w2=stk(lambda p: p["w2"]), b2=stk(lambda p: p["b2"]),
        g2=stk(lambda p: p["g2"]), be2=stk(lambda p: p["be2"]),
    )


def transformer_encoder_forward(x, mask, params_list):
    B, S, H = x.shape
    packed = pack_params(params_list)
    NB = packed["w_qkvo"].shape[0]

    x2d = x.reshape(B * S, H)                       # whole batch in one shot
    mask2d = mask.reshape(B, S).astype(jnp.float32)

    # ---- constant additive score bias, built once on the host ----
    # Row/col ordering of the stacked attention is (head, batch, seq); rows
    # within group g = h*B + b belong to one (head, batch) pair.
    NS = NUM_HEADS * B * S
    idx = jnp.arange(NS)
    grp = idx // S
    blockdiag = jnp.where(grp[:, None] == grp[None, :], 0.0, -1e9)
    col_b = grp % B
    col_s = idx % S
    keypad = (mask2d[col_b, col_s] - 1.0) * 1e9     # (NS,) per key column
    attn_bias = (blockdiag + keypad[None, :]).astype(jnp.float32)

    kernel = functools.partial(encoder_stack_kernel,
                               num_blocks=NB, num_heads=NUM_HEADS)

    vmem_spec = lambda: pl.BlockSpec(memory_space=pltpu.MemorySpace.VMEM)

    out2d = pl.pallas_call(
        kernel,
        out_shape=jax.ShapeDtypeStruct((B * S, H), x.dtype),
        # No grid: everything (activations + ~70 KB of stacked weights + the
        # constant bias) lives whole in VMEM for the single invocation.
        in_specs=[vmem_spec() for _ in range(12)],
        out_specs=vmem_spec(),
    )(x2d, attn_bias,
      packed["w_qkvo"], packed["b_qkvo"], packed["g1"], packed["be1"],
      packed["w1"], packed["b1"], packed["w2"], packed["b2"],
      packed["g2"], packed["be2"])

    return out2d.reshape(B, S, H)


# --------------------------- params ------------------------------------------
def init_block_params(key):
    ks = jax.random.split(key, 6)

    def w(k, shape):
        return (0.02 * jax.random.normal(k, shape)).astype(jnp.float32)

    return dict(
        wq=w(ks[0], (HIDDEN, HIDDEN)), bq=jnp.zeros((1, HIDDEN), jnp.float32),
        wk=w(ks[1], (HIDDEN, HIDDEN)), bk=jnp.zeros((1, HIDDEN), jnp.float32),
        wv=w(ks[2], (HIDDEN, HIDDEN)), bv=jnp.zeros((1, HIDDEN), jnp.float32),
        wo=w(ks[3], (HIDDEN, HIDDEN)), bo=jnp.zeros((1, HIDDEN), jnp.float32),
        g1=jnp.ones((1, HIDDEN), jnp.float32), be1=jnp.zeros((1, HIDDEN), jnp.float32),
        w1=w(ks[4], (HIDDEN, FF)),     b1=jnp.zeros((1, FF), jnp.float32),
        w2=w(ks[5], (FF, HIDDEN)),     b2=jnp.zeros((1, HIDDEN), jnp.float32),
        g2=jnp.ones((1, HIDDEN), jnp.float32), be2=jnp.zeros((1, HIDDEN), jnp.float32),
    )


# --------------------------- pure-JAX reference -------------------------------
def _ref_block(x, mask, p):
    neg = (mask - 1.0) * 1e9  # (B,1,S)
    q = x @ p["wq"] + p["bq"]
    k = x @ p["wk"] + p["bk"]
    v = x @ p["wv"] + p["bv"]
    B, S, H = x.shape
    qh = q.reshape(B, S, NUM_HEADS, HEAD_DIM).transpose(0, 2, 1, 3)
    kh = k.reshape(B, S, NUM_HEADS, HEAD_DIM).transpose(0, 2, 1, 3)
    vh = v.reshape(B, S, NUM_HEADS, HEAD_DIM).transpose(0, 2, 1, 3)
    scores = jnp.einsum("bhqd,bhkd->bhqk", qh, kh) / (HEAD_DIM ** 0.5)
    scores = scores + neg[:, :, None, :]
    p_attn = jax.nn.softmax(scores, axis=-1)
    ctx = jnp.einsum("bhqk,bhkd->bhqd", p_attn, vh).transpose(0, 2, 1, 3).reshape(B, S, H)
    attn_out = ctx @ p["wo"] + p["bo"]

    def ln(z, g, b):
        mu = jnp.mean(z, -1, keepdims=True)
        var = jnp.mean((z - mu) ** 2, -1, keepdims=True)
        return (z - mu) * jax.lax.rsqrt(var + LN_EPS) * g + b

    y = ln(x + attn_out, p["g1"], p["be1"])
    ffn = jnp.maximum(y @ p["w1"] + p["b1"], 0.0) @ p["w2"] + p["b2"]
    return ln(y + ffn, p["g2"], p["be2"])


def _ref_encoder(x, mask, params_list):
    for p in params_list:
        x = _ref_block(x, mask, p)
    return x


# --------------------------- main ---------------------------------------------
if __name__ == "__main__":
    key = jax.random.PRNGKey(0)
    kx, *kblocks = jax.random.split(key, NUM_BLOCKS + 1)

    x = jax.random.normal(kx, (BATCH, SEQ, HIDDEN), dtype=jnp.float32)
    # attention mask: batch 0 fully attends, batch 1 masks the last 2 positions
    mask = jnp.ones((BATCH, 1, SEQ), dtype=jnp.float32)
    mask = mask.at[1, 0, -2:].set(0.0)

    params_list = [init_block_params(k) for k in kblocks]

    out = transformer_encoder_forward(x, mask, params_list)
    out = jax.block_until_ready(out)

    ref = _ref_encoder(x, mask, params_list)
    assert out.shape == (BATCH, SEQ, HIDDEN)
    # tolerance accounts for the approximate (EUP) reciprocal in the softmax
    err = float(jnp.max(jnp.abs(out - ref)))
    assert jnp.allclose(out, ref, atol=1e-2, rtol=1e-2), err

    print("KERNEL_OK")
</pallas_src>

<mosaic_0001>
module attributes {stable_mosaic.version = 11 : i64} {
  func.func @encoder_stack_kernel(%arg0: memref<16x32xf32, #tpu.memory_space<vmem>>, %arg1: memref<64x64xf32, #tpu.memory_space<vmem>>, %arg2: memref<2x32x128xf32, #tpu.memory_space<vmem>>, %arg3: memref<2x1x128xf32, #tpu.memory_space<vmem>>, %arg4: memref<2x1x32xf32, #tpu.memory_space<vmem>>, %arg5: memref<2x1x32xf32, #tpu.memory_space<vmem>>, %arg6: memref<2x32x64xf32, #tpu.memory_space<vmem>>, %arg7: memref<2x1x64xf32, #tpu.memory_space<vmem>>, %arg8: memref<2x64x32xf32, #tpu.memory_space<vmem>>, %arg9: memref<2x1x32xf32, #tpu.memory_space<vmem>>, %arg10: memref<2x1x32xf32, #tpu.memory_space<vmem>>, %arg11: memref<2x1x32xf32, #tpu.memory_space<vmem>>, %arg12: memref<16x32xf32, #tpu.memory_space<vmem>>) attributes {dimension_semantics = [], scalar_prefetch = 0 : i64, scratch_operands = 0 : i64, tpu.core_type = #tpu.core_type<tc>} {
    %c0 = arith.constant 0 : index
    %c0_0 = arith.constant 0 : index
    %0 = vector.load %arg1[%c0, %c0_0] : memref<64x64xf32, #tpu.memory_space<vmem>>, vector<64x64xf32>
    %c0_1 = arith.constant 0 : index
    %c0_2 = arith.constant 0 : index
    %1 = vector.load %arg0[%c0_1, %c0_2] : memref<16x32xf32, #tpu.memory_space<vmem>>, vector<16x32xf32>
    %c0_3 = arith.constant 0 : index
    %c0_4 = arith.constant 0 : index
    %c0_5 = arith.constant 0 : index
    %2 = vector.load %arg2[%c0_3, %c0_4, %c0_5] : memref<2x32x128xf32, #tpu.memory_space<vmem>>, vector<1x32x128xf32>
    %3 = vector.shape_cast %2 : vector<1x32x128xf32> to vector<32x128xf32>
    %c0_6 = arith.constant 0 : index
    %c0_7 = arith.constant 0 : index
    %c0_8 = arith.constant 0 : index
    %4 = vector.load %arg3[%c0_6, %c0_7, %c0_8] : memref<2x1x128xf32, #tpu.memory_space<vmem>>, vector<1x1x128xf32>
    %5 = vector.shape_cast %4 : vector<1x1x128xf32> to vector<1x128xf32>
    %cst = arith.constant dense<0.000000e+00> : vector<16x128xf32>
    %6 = tpu.matmul %1, %3, %cst {dimension_numbers = #tpu.dot_dimension_numbers<[1], [0], [0], [1], [0, 0, 1, 1], [], []>} : vector<16x32xf32>, vector<32x128xf32>, vector<16x128xf32> -> vector<16x128xf32>
    %7 = vector.broadcast %5 : vector<1x128xf32> to vector<16x128xf32>
    %8 = arith.addf %6, %7 : vector<16x128xf32>
    %9 = vector.extract_strided_slice %8 {offsets = [0, 0], sizes = [16, 8], strides = [1, 1]} : vector<16x128xf32> to vector<16x8xf32>
    %10 = vector.extract_strided_slice %8 {offsets = [0, 8], sizes = [16, 8], strides = [1, 1]} : vector<16x128xf32> to vector<16x8xf32>
    %11 = vector.extract_strided_slice %8 {offsets = [0, 16], sizes = [16, 8], strides = [1, 1]} : vector<16x128xf32> to vector<16x8xf32>
    %12 = vector.extract_strided_slice %8 {offsets = [0, 24], sizes = [16, 8], strides = [1, 1]} : vector<16x128xf32> to vector<16x8xf32>
    %13 = tpu.concatenate %9, %10, %11, %12 in 0 : vector<16x8xf32>, vector<16x8xf32>, vector<16x8xf32>, vector<16x8xf32> -> vector<64x8xf32>
    %14 = vector.extract_strided_slice %8 {offsets = [0, 32], sizes = [16, 8], strides = [1, 1]} : vector<16x128xf32> to vector<16x8xf32>
    %15 = vector.extract_strided_slice %8 {offsets = [0, 40], sizes = [16, 8], strides = [1, 1]} : vector<16x128xf32> to vector<16x8xf32>
    %16 = vector.extract_strided_slice %8 {offsets = [0, 48], sizes = [16, 8], strides = [1, 1]} : vector<16x128xf32> to vector<16x8xf32>
    %17 = vector.extract_strided_slice %8 {offsets = [0, 56], sizes = [16, 8], strides = [1, 1]} : vector<16x128xf32> to vector<16x8xf32>
    %18 = tpu.concatenate %14, %15, %16, %17 in 0 : vector<16x8xf32>, vector<16x8xf32>, vector<16x8xf32>, vector<16x8xf32> -> vector<64x8xf32>
    %19 = vector.extract_strided_slice %8 {offsets = [0, 64], sizes = [16, 8], strides = [1, 1]} : vector<16x128xf32> to vector<16x8xf32>
    %20 = vector.extract_strided_slice %8 {offsets = [0, 72], sizes = [16, 8], strides = [1, 1]} : vector<16x128xf32> to vector<16x8xf32>
    %21 = vector.extract_strided_slice %8 {offsets = [0, 80], sizes = [16, 8], strides = [1, 1]} : vector<16x128xf32> to vector<16x8xf32>
    %22 = vector.extract_strided_slice %8 {offsets = [0, 88], sizes = [16, 8], strides = [1, 1]} : vector<16x128xf32> to vector<16x8xf32>
    %23 = tpu.concatenate %19, %20, %21, %22 in 0 : vector<16x8xf32>, vector<16x8xf32>, vector<16x8xf32>, vector<16x8xf32> -> vector<64x8xf32>
    %cst_9 = arith.constant dense<0.000000e+00> : vector<64x64xf32>
    %24 = tpu.matmul %13, %18, %cst_9 {dimension_numbers = #tpu.dot_dimension_numbers<[1], [1], [0], [0], [0, 0, 1, 0], [], []>} : vector<64x8xf32>, vector<64x8xf32>, vector<64x64xf32> -> vector<64x64xf32>
    %25 = arith.addf %24, %0 : vector<64x64xf32>
    %cst_10 = arith.constant dense<0xFF800000> : vector<64xf32>
    %26 = vector.multi_reduction <maximumf>, %25, %cst_10 [1] : vector<64x64xf32> to vector<64xf32>
    %27 = vector.shape_cast %26 : vector<64xf32> to vector<64x1xf32>
    %28 = vector.broadcast %27 : vector<64x1xf32> to vector<64x64xf32>
    %29 = arith.subf %25, %28 : vector<64x64xf32>
    %30 = math.exp %29 : vector<64x64xf32>
    %cst_11 = arith.constant dense<0.000000e+00> : vector<64xf32>
    %31 = vector.multi_reduction <add>, %30, %cst_11 [1] : vector<64x64xf32> to vector<64xf32>
    %32 = vector.shape_cast %31 : vector<64xf32> to vector<64x1xf32>
    %33 = tpu.reciprocal %32 {approx = true} : vector<64x1xf32> -> vector<64x1xf32>
    %34 = vector.broadcast %33 : vector<64x1xf32> to vector<64x64xf32>
    %35 = arith.mulf %30, %34 : vector<64x64xf32>
    %cst_12 = arith.constant dense<0.000000e+00> : vector<64x8xf32>
    %36 = tpu.matmul %35, %23, %cst_12 {dimension_numbers = #tpu.dot_dimension_numbers<[1], [0], [0], [1], [0, 0, 1, 1], [], []>} : vector<64x64xf32>, vector<64x8xf32>, vector<64x8xf32> -> vector<64x8xf32>
    %37 = vector.extract_strided_slice %36 {offsets = [0, 0], sizes = [16, 8], strides = [1, 1]} : vector<64x8xf32> to vector<16x8xf32>
    %38 = vector.extract_strided_slice %36 {offsets = [16, 0], sizes = [16, 8], strides = [1, 1]} : vector<64x8xf32> to vector<16x8xf32>
    %39 = vector.extract_strided_slice %36 {offsets = [32, 0], sizes = [16, 8], strides = [1, 1]} : vector<64x8xf32> to vector<16x8xf32>
    %40 = vector.extract_strided_slice %36 {offsets = [48, 0], sizes = [16, 8], strides = [1, 1]} : vector<64x8xf32> to vector<16x8xf32>
    %41 = tpu.concatenate %37, %38, %39, %40 in 1 : vector<16x8xf32>, vector<16x8xf32>, vector<16x8xf32>, vector<16x8xf32> -> vector<16x32xf32>
    %42 = vector.extract_strided_slice %3 {offsets = [0, 96], sizes = [32, 32], strides = [1, 1]} : vector<32x128xf32> to vector<32x32xf32>
    %cst_13 = arith.constant dense<0.000000e+00> : vector<16x32xf32>
    %43 = tpu.matmul %41, %42, %cst_13 {dimension_numbers = #tpu.dot_dimension_numbers<[1], [0], [0], [1], [0, 0, 1, 1], [], []>} : vector<16x32xf32>, vector<32x32xf32>, vector<16x32xf32> -> vector<16x32xf32>
    %44 = vector.extract_strided_slice %5 {offsets = [0, 96], sizes = [1, 32], strides = [1, 1]} : vector<1x128xf32> to vector<1x32xf32>
    %45 = vector.broadcast %44 : vector<1x32xf32> to vector<16x32xf32>
    %46 = arith.addf %43, %45 : vector<16x32xf32>
    %47 = arith.addf %1, %46 : vector<16x32xf32>
    %c0_14 = arith.constant 0 : index
    %c0_15 = arith.constant 0 : index
    %c0_16 = arith.constant 0 : index
    %48 = vector.load %arg4[%c0_14, %c0_15, %c0_16] : memref<2x1x32xf32, #tpu.memory_space<vmem>>, vector<1x1x32xf32>
    %49 = vector.shape_cast %48 : vector<1x1x32xf32> to vector<1x32xf32>
    %c0_17 = arith.constant 0 : index
    %c0_18 = arith.constant 0 : index
    %c0_19 = arith.constant 0 : index
    %50 = vector.load %arg5[%c0_17, %c0_18, %c0_19] : memref<2x1x32xf32, #tpu.memory_space<vmem>>, vector<1x1x32xf32>
    %51 = vector.shape_cast %50 : vector<1x1x32xf32> to vector<1x32xf32>
    %cst_20 = arith.constant dense<0.000000e+00> : vector<16xf32>
    %52 = vector.multi_reduction <add>, %47, %cst_20 [1] : vector<16x32xf32> to vector<16xf32>
    %53 = vector.shape_cast %52 : vector<16xf32> to vector<16x1xf32>
    %cst_21 = arith.constant 3.200000e+01 : f32
    %54 = vector.broadcast %cst_21 : f32 to vector<16x1xf32>
    %55 = arith.divf %53, %54 : vector<16x1xf32>
    %56 = vector.broadcast %55 : vector<16x1xf32> to vector<16x32xf32>
    %57 = arith.subf %47, %56 : vector<16x32xf32>
    %58 = arith.mulf %57, %57 : vector<16x32xf32>
    %cst_22 = arith.constant dense<0.000000e+00> : vector<16xf32>
    %59 = vector.multi_reduction <add>, %58, %cst_22 [1] : vector<16x32xf32> to vector<16xf32>
    %60 = vector.shape_cast %59 : vector<16xf32> to vector<16x1xf32>
    %cst_23 = arith.constant 3.200000e+01 : f32
    %61 = vector.broadcast %cst_23 : f32 to vector<16x1xf32>
    %62 = arith.divf %60, %61 : vector<16x1xf32>
    %cst_24 = arith.constant 9.99999974E-6 : f32
    %63 = vector.broadcast %cst_24 : f32 to vector<16x1xf32>
    %64 = arith.addf %62, %63 : vector<16x1xf32>
    %65 = math.rsqrt %64 : vector<16x1xf32>
    %66 = vector.broadcast %55 : vector<16x1xf32> to vector<16x32xf32>
    %67 = arith.subf %47, %66 : vector<16x32xf32>
    %68 = vector.broadcast %65 : vector<16x1xf32> to vector<16x32xf32>
    %69 = arith.mulf %67, %68 : vector<16x32xf32>
    %70 = vector.broadcast %49 : vector<1x32xf32> to vector<16x32xf32>
    %71 = arith.mulf %69, %70 : vector<16x32xf32>
    %72 = vector.broadcast %51 : vector<1x32xf32> to vector<16x32xf32>
    %73 = arith.addf %71, %72 : vector<16x32xf32>
    %c0_25 = arith.constant 0 : index
    %c0_26 = arith.constant 0 : index
    %c0_27 = arith.constant 0 : index
    %74 = vector.load %arg6[%c0_25, %c0_26, %c0_27] : memref<2x32x64xf32, #tpu.memory_space<vmem>>, vector<1x32x64xf32>
    %75 = vector.shape_cast %74 : vector<1x32x64xf32> to vector<32x64xf32>
    %cst_28 = arith.constant dense<0.000000e+00> : vector<16x64xf32>
    %76 = tpu.matmul %73, %75, %cst_28 {dimension_numbers = #tpu.dot_dimension_numbers<[1], [0], [0], [1], [0, 0, 1, 1], [], []>} : vector<16x32xf32>, vector<32x64xf32>, vector<16x64xf32> -> vector<16x64xf32>
    %c0_29 = arith.constant 0 : index
    %c0_30 = arith.constant 0 : index
    %c0_31 = arith.constant 0 : index
    %77 = vector.load %arg7[%c0_29, %c0_30, %c0_31] : memref<2x1x64xf32, #tpu.memory_space<vmem>>, vector<1x1x64xf32>
    %78 = vector.shape_cast %77 : vector<1x1x64xf32> to vector<1x64xf32>
    %79 = vector.broadcast %78 : vector<1x64xf32> to vector<16x64xf32>
    %80 = arith.addf %76, %79 : vector<16x64xf32>
    %cst_32 = arith.constant 0.000000e+00 : f32
    %81 = vector.broadcast %cst_32 : f32 to vector<16x64xf32>
    %82 = arith.maximumf %80, %81 : vector<16x64xf32>
    %c0_33 = arith.constant 0 : index
    %c0_34 = arith.constant 0 : index
    %c0_35 = arith.constant 0 : index
    %83 = vector.load %arg8[%c0_33, %c0_34, %c0_35] : memref<2x64x32xf32, #tpu.memory_space<vmem>>, vector<1x64x32xf32>
    %84 = vector.shape_cast %83 : vector<1x64x32xf32> to vector<64x32xf32>
    %cst_36 = arith.constant dense<0.000000e+00> : vector<16x32xf32>
    %85 = tpu.matmul %82, %84, %cst_36 {dimension_numbers = #tpu.dot_dimension_numbers<[1], [0], [0], [1], [0, 0, 1, 1], [], []>} : vector<16x64xf32>, vector<64x32xf32>, vector<16x32xf32> -> vector<16x32xf32>
    %c0_37 = arith.constant 0 : index
    %c0_38 = arith.constant 0 : index
    %c0_39 = arith.constant 0 : index
    %86 = vector.load %arg9[%c0_37, %c0_38, %c0_39] : memref<2x1x32xf32, #tpu.memory_space<vmem>>, vector<1x1x32xf32>
    %87 = vector.shape_cast %86 : vector<1x1x32xf32> to vector<1x32xf32>
    %88 = vector.broadcast %87 : vector<1x32xf32> to vector<16x32xf32>
    %89 = arith.addf %85, %88 : vector<16x32xf32>
    %90 = arith.addf %73, %89 : vector<16x32xf32>
    %c0_40 = arith.constant 0 : index
    %c0_41 = arith.constant 0 : index
    %c0_42 = arith.constant 0 : index
    %91 = vector.load %arg10[%c0_40, %c0_41, %c0_42] : memref<2x1x32xf32, #tpu.memory_space<vmem>>, vector<1x1x32xf32>
    %92 = vector.shape_cast %91 : vector<1x1x32xf32> to vector<1x32xf32>
    %c0_43 = arith.constant 0 : index
    %c0_44 = arith.constant 0 : index
    %c0_45 = arith.constant 0 : index
    %93 = vector.load %arg11[%c0_43, %c0_44, %c0_45] : memref<2x1x32xf32, #tpu.memory_space<vmem>>, vector<1x1x32xf32>
    %94 = vector.shape_cast %93 : vector<1x1x32xf32> to vector<1x32xf32>
    %cst_46 = arith.constant dense<0.000000e+00> : vector<16xf32>
    %95 = vector.multi_reduction <add>, %90, %cst_46 [1] : vector<16x32xf32> to vector<16xf32>
    %96 = vector.shape_cast %95 : vector<16xf32> to vector<16x1xf32>
    %cst_47 = arith.constant 3.200000e+01 : f32
    %97 = vector.broadcast %cst_47 : f32 to vector<16x1xf32>
    %98 = arith.divf %96, %97 : vector<16x1xf32>
    %99 = vector.broadcast %98 : vector<16x1xf32> to vector<16x32xf32>
    %100 = arith.subf %90, %99 : vector<16x32xf32>
    %101 = arith.mulf %100, %100 : vector<16x32xf32>
    %cst_48 = arith.constant dense<0.000000e+00> : vector<16xf32>
    %102 = vector.multi_reduction <add>, %101, %cst_48 [1] : vector<16x32xf32> to vector<16xf32>
    %103 = vector.shape_cast %102 : vector<16xf32> to vector<16x1xf32>
    %cst_49 = arith.constant 3.200000e+01 : f32
    %104 = vector.broadcast %cst_49 : f32 to vector<16x1xf32>
    %105 = arith.divf %103, %104 : vector<16x1xf32>
    %cst_50 = arith.constant 9.99999974E-6 : f32
    %106 = vector.broadcast %cst_50 : f32 to vector<16x1xf32>
    %107 = arith.addf %105, %106 : vector<16x1xf32>
    %108 = math.rsqrt %107 : vector<16x1xf32>
    %109 = vector.broadcast %98 : vector<16x1xf32> to vector<16x32xf32>
    %110 = arith.subf %90, %109 : vector<16x32xf32>
    %111 = vector.broadcast %108 : vector<16x1xf32> to vector<16x32xf32>
    %112 = arith.mulf %110, %111 : vector<16x32xf32>
    %113 = vector.broadcast %92 : vector<1x32xf32> to vector<16x32xf32>
    %114 = arith.mulf %112, %113 : vector<16x32xf32>
    %115 = vector.broadcast %94 : vector<1x32xf32> to vector<16x32xf32>
    %116 = arith.addf %114, %115 : vector<16x32xf32>
    %c1 = arith.constant 1 : index
    %c0_51 = arith.constant 0 : index
    %c0_52 = arith.constant 0 : index
    %117 = vector.load %arg2[%c1, %c0_51, %c0_52] : memref<2x32x128xf32, #tpu.memory_space<vmem>>, vector<1x32x128xf32>
    %118 = vector.shape_cast %117 : vector<1x32x128xf32> to vector<32x128xf32>
    %c1_53 = arith.constant 1 : index
    %c0_54 = arith.constant 0 : index
    %c0_55 = arith.constant 0 : index
    %119 = vector.load %arg3[%c1_53, %c0_54, %c0_55] : memref<2x1x128xf32, #tpu.memory_space<vmem>>, vector<1x1x128xf32>
    %120 = vector.shape_cast %119 : vector<1x1x128xf32> to vector<1x128xf32>
    %cst_56 = arith.constant dense<0.000000e+00> : vector<16x128xf32>
    %121 = tpu.matmul %116, %118, %cst_56 {dimension_numbers = #tpu.dot_dimension_numbers<[1], [0], [0], [1], [0, 0, 1, 1], [], []>} : vector<16x32xf32>, vector<32x128xf32>, vector<16x128xf32> -> vector<16x128xf32>
    %122 = vector.broadcast %120 : vector<1x128xf32> to vector<16x128xf32>
    %123 = arith.addf %121, %122 : vector<16x128xf32>
    %124 = vector.extract_strided_slice %123 {offsets = [0, 0], sizes = [16, 8], strides = [1, 1]} : vector<16x128xf32> to vector<16x8xf32>
    %125 = vector.extract_strided_slice %123 {offsets = [0, 8], sizes = [16, 8], strides = [1, 1]} : vector<16x128xf32> to vector<16x8xf32>
    %126 = vector.extract_strided_slice %123 {offsets = [0, 16], sizes = [16, 8], strides = [1, 1]} : vector<16x128xf32> to vector<16x8xf32>
    %127 = vector.extract_strided_slice %123 {offsets = [0, 24], sizes = [16, 8], strides = [1, 1]} : vector<16x128xf32> to vector<16x8xf32>
    %128 = tpu.concatenate %124, %125, %126, %127 in 0 : vector<16x8xf32>, vector<16x8xf32>, vector<16x8xf32>, vector<16x8xf32> -> vector<64x8xf32>
    %129 = vector.extract_strided_slice %123 {offsets = [0, 32], sizes = [16, 8], strides = [1, 1]} : vector<16x128xf32> to vector<16x8xf32>
    %130 = vector.extract_strided_slice %123 {offsets = [0, 40], sizes = [16, 8], strides = [1, 1]} : vector<16x128xf32> to vector<16x8xf32>
    %131 = vector.extract_strided_slice %123 {offsets = [0, 48], sizes = [16, 8], strides = [1, 1]} : vector<16x128xf32> to vector<16x8xf32>
    %132 = vector.extract_strided_slice %123 {offsets = [0, 56], sizes = [16, 8], strides = [1, 1]} : vector<16x128xf32> to vector<16x8xf32>
    %133 = tpu.concatenate %129, %130, %131, %132 in 0 : vector<16x8xf32>, vector<16x8xf32>, vector<16x8xf32>, vector<16x8xf32> -> vector<64x8xf32>
    %134 = vector.extract_strided_slice %123 {offsets = [0, 64], sizes = [16, 8], strides = [1, 1]} : vector<16x128xf32> to vector<16x8xf32>
    %135 = vector.extract_strided_slice %123 {offsets = [0, 72], sizes = [16, 8], strides = [1, 1]} : vector<16x128xf32> to vector<16x8xf32>
    %136 = vector.extract_strided_slice %123 {offsets = [0, 80], sizes = [16, 8], strides = [1, 1]} : vector<16x128xf32> to vector<16x8xf32>
    %137 = vector.extract_strided_slice %123 {offsets = [0, 88], sizes = [16, 8], strides = [1, 1]} : vector<16x128xf32> to vector<16x8xf32>
    %138 = tpu.concatenate %134, %135, %136, %137 in 0 : vector<16x8xf32>, vector<16x8xf32>, vector<16x8xf32>, vector<16x8xf32> -> vector<64x8xf32>
    %cst_57 = arith.constant dense<0.000000e+00> : vector<64x64xf32>
    %139 = tpu.matmul %128, %133, %cst_57 {dimension_numbers = #tpu.dot_dimension_numbers<[1], [1], [0], [0], [0, 0, 1, 0], [], []>} : vector<64x8xf32>, vector<64x8xf32>, vector<64x64xf32> -> vector<64x64xf32>
    %140 = arith.addf %139, %0 : vector<64x64xf32>
    %cst_58 = arith.constant dense<0xFF800000> : vector<64xf32>
    %141 = vector.multi_reduction <maximumf>, %140, %cst_58 [1] : vector<64x64xf32> to vector<64xf32>
    %142 = vector.shape_cast %141 : vector<64xf32> to vector<64x1xf32>
    %143 = vector.broadcast %142 : vector<64x1xf32> to vector<64x64xf32>
    %144 = arith.subf %140, %143 : vector<64x64xf32>
    %145 = math.exp %144 : vector<64x64xf32>
    %cst_59 = arith.constant dense<0.000000e+00> : vector<64xf32>
    %146 = vector.multi_reduction <add>, %145, %cst_59 [1] : vector<64x64xf32> to vector<64xf32>
    %147 = vector.shape_cast %146 : vector<64xf32> to vector<64x1xf32>
    %148 = tpu.reciprocal %147 {approx = true} : vector<64x1xf32> -> vector<64x1xf32>
    %149 = vector.broadcast %148 : vector<64x1xf32> to vector<64x64xf32>
    %150 = arith.mulf %145, %149 : vector<64x64xf32>
    %cst_60 = arith.constant dense<0.000000e+00> : vector<64x8xf32>
    %151 = tpu.matmul %150, %138, %cst_60 {dimension_numbers = #tpu.dot_dimension_numbers<[1], [0], [0], [1], [0, 0, 1, 1], [], []>} : vector<64x64xf32>, vector<64x8xf32>, vector<64x8xf32> -> vector<64x8xf32>
    %152 = vector.extract_strided_slice %151 {offsets = [0, 0], sizes = [16, 8], strides = [1, 1]} : vector<64x8xf32> to vector<16x8xf32>
    %153 = vector.extract_strided_slice %151 {offsets = [16, 0], sizes = [16, 8], strides = [1, 1]} : vector<64x8xf32> to vector<16x8xf32>
    %154 = vector.extract_strided_slice %151 {offsets = [32, 0], sizes = [16, 8], strides = [1, 1]} : vector<64x8xf32> to vector<16x8xf32>
    %155 = vector.extract_strided_slice %151 {offsets = [48, 0], sizes = [16, 8], strides = [1, 1]} : vector<64x8xf32> to vector<16x8xf32>
    %156 = tpu.concatenate %152, %153, %154, %155 in 1 : vector<16x8xf32>, vector<16x8xf32>, vector<16x8xf32>, vector<16x8xf32> -> vector<16x32xf32>
    %157 = vector.extract_strided_slice %118 {offsets = [0, 96], sizes = [32, 32], strides = [1, 1]} : vector<32x128xf32> to vector<32x32xf32>
    %cst_61 = arith.constant dense<0.000000e+00> : vector<16x32xf32>
    %158 = tpu.matmul %156, %157, %cst_61 {dimension_numbers = #tpu.dot_dimension_numbers<[1], [0], [0], [1], [0, 0, 1, 1], [], []>} : vector<16x32xf32>, vector<32x32xf32>, vector<16x32xf32> -> vector<16x32xf32>
    %159 = vector.extract_strided_slice %120 {offsets = [0, 96], sizes = [1, 32], strides = [1, 1]} : vector<1x128xf32> to vector<1x32xf32>
    %160 = vector.broadcast %159 : vector<1x32xf32> to vector<16x32xf32>
    %161 = arith.addf %158, %160 : vector<16x32xf32>
    %162 = arith.addf %116, %161 : vector<16x32xf32>
    %c1_62 = arith.constant 1 : index
    %c0_63 = arith.constant 0 : index
    %c0_64 = arith.constant 0 : index
    %163 = vector.load %arg4[%c1_62, %c0_63, %c0_64] : memref<2x1x32xf32, #tpu.memory_space<vmem>>, vector<1x1x32xf32>
    %164 = vector.shape_cast %163 : vector<1x1x32xf32> to vector<1x32xf32>
    %c1_65 = arith.constant 1 : index
    %c0_66 = arith.constant 0 : index
    %c0_67 = arith.constant 0 : index
    %165 = vector.load %arg5[%c1_65, %c0_66, %c0_67] : memref<2x1x32xf32, #tpu.memory_space<vmem>>, vector<1x1x32xf32>
    %166 = vector.shape_cast %165 : vector<1x1x32xf32> to vector<1x32xf32>
    %cst_68 = arith.constant dense<0.000000e+00> : vector<16xf32>
    %167 = vector.multi_reduction <add>, %162, %cst_68 [1] : vector<16x32xf32> to vector<16xf32>
    %168 = vector.shape_cast %167 : vector<16xf32> to vector<16x1xf32>
    %cst_69 = arith.constant 3.200000e+01 : f32
    %169 = vector.broadcast %cst_69 : f32 to vector<16x1xf32>
    %170 = arith.divf %168, %169 : vector<16x1xf32>
    %171 = vector.broadcast %170 : vector<16x1xf32> to vector<16x32xf32>
    %172 = arith.subf %162, %171 : vector<16x32xf32>
    %173 = arith.mulf %172, %172 : vector<16x32xf32>
    %cst_70 = arith.constant dense<0.000000e+00> : vector<16xf32>
    %174 = vector.multi_reduction <add>, %173, %cst_70 [1] : vector<16x32xf32> to vector<16xf32>
    %175 = vector.shape_cast %174 : vector<16xf32> to vector<16x1xf32>
    %cst_71 = arith.constant 3.200000e+01 : f32
    %176 = vector.broadcast %cst_71 : f32 to vector<16x1xf32>
    %177 = arith.divf %175, %176 : vector<16x1xf32>
    %cst_72 = arith.constant 9.99999974E-6 : f32
    %178 = vector.broadcast %cst_72 : f32 to vector<16x1xf32>
    %179 = arith.addf %177, %178 : vector<16x1xf32>
    %180 = math.rsqrt %179 : vector<16x1xf32>
    %181 = vector.broadcast %170 : vector<16x1xf32> to vector<16x32xf32>
    %182 = arith.subf %162, %181 : vector<16x32xf32>
    %183 = vector.broadcast %180 : vector<16x1xf32> to vector<16x32xf32>
    %184 = arith.mulf %182, %183 : vector<16x32xf32>
    %185 = vector.broadcast %164 : vector<1x32xf32> to vector<16x32xf32>
    %186 = arith.mulf %184, %185 : vector<16x32xf32>
    %187 = vector.broadcast %166 : vector<1x32xf32> to vector<16x32xf32>
    %188 = arith.addf %186, %187 : vector<16x32xf32>
    %c1_73 = arith.constant 1 : index
    %c0_74 = arith.constant 0 : index
    %c0_75 = arith.constant 0 : index
    %189 = vector.load %arg6[%c1_73, %c0_74, %c0_75] : memref<2x32x64xf32, #tpu.memory_space<vmem>>, vector<1x32x64xf32>
    %190 = vector.shape_cast %189 : vector<1x32x64xf32> to vector<32x64xf32>
    %cst_76 = arith.constant dense<0.000000e+00> : vector<16x64xf32>
    %191 = tpu.matmul %188, %190, %cst_76 {dimension_numbers = #tpu.dot_dimension_numbers<[1], [0], [0], [1], [0, 0, 1, 1], [], []>} : vector<16x32xf32>, vector<32x64xf32>, vector<16x64xf32> -> vector<16x64xf32>
    %c1_77 = arith.constant 1 : index
    %c0_78 = arith.constant 0 : index
    %c0_79 = arith.constant 0 : index
    %192 = vector.load %arg7[%c1_77, %c0_78, %c0_79] : memref<2x1x64xf32, #tpu.memory_space<vmem>>, vector<1x1x64xf32>
    %193 = vector.shape_cast %192 : vector<1x1x64xf32> to vector<1x64xf32>
    %194 = vector.broadcast %193 : vector<1x64xf32> to vector<16x64xf32>
    %195 = arith.addf %191, %194 : vector<16x64xf32>
    %cst_80 = arith.constant 0.000000e+00 : f32
    %196 = vector.broadcast %cst_80 : f32 to vector<16x64xf32>
    %197 = arith.maximumf %195, %196 : vector<16x64xf32>
    %c1_81 = arith.constant 1 : index
    %c0_82 = arith.constant 0 : index
    %c0_83 = arith.constant 0 : index
    %198 = vector.load %arg8[%c1_81, %c0_82, %c0_83] : memref<2x64x32xf32, #tpu.memory_space<vmem>>, vector<1x64x32xf32>
    %199 = vector.shape_cast %198 : vector<1x64x32xf32> to vector<64x32xf32>
    %cst_84 = arith.constant dense<0.000000e+00> : vector<16x32xf32>
    %200 = tpu.matmul %197, %199, %cst_84 {dimension_numbers = #tpu.dot_dimension_numbers<[1], [0], [0], [1], [0, 0, 1, 1], [], []>} : vector<16x64xf32>, vector<64x32xf32>, vector<16x32xf32> -> vector<16x32xf32>
    %c1_85 = arith.constant 1 : index
    %c0_86 = arith.constant 0 : index
    %c0_87 = arith.constant 0 : index
    %201 = vector.load %arg9[%c1_85, %c0_86, %c0_87] : memref<2x1x32xf32, #tpu.memory_space<vmem>>, vector<1x1x32xf32>
    %202 = vector.shape_cast %201 : vector<1x1x32xf32> to vector<1x32xf32>
    %203 = vector.broadcast %202 : vector<1x32xf32> to vector<16x32xf32>
    %204 = arith.addf %200, %203 : vector<16x32xf32>
    %205 = arith.addf %188, %204 : vector<16x32xf32>
    %c1_88 = arith.constant 1 : index
    %c0_89 = arith.constant 0 : index
    %c0_90 = arith.constant 0 : index
    %206 = vector.load %arg10[%c1_88, %c0_89, %c0_90] : memref<2x1x32xf32, #tpu.memory_space<vmem>>, vector<1x1x32xf32>
    %207 = vector.shape_cast %206 : vector<1x1x32xf32> to vector<1x32xf32>
    %c1_91 = arith.constant 1 : index
    %c0_92 = arith.constant 0 : index
    %c0_93 = arith.constant 0 : index
    %208 = vector.load %arg11[%c1_91, %c0_92, %c0_93] : memref<2x1x32xf32, #tpu.memory_space<vmem>>, vector<1x1x32xf32>
    %209 = vector.shape_cast %208 : vector<1x1x32xf32> to vector<1x32xf32>
    %cst_94 = arith.constant dense<0.000000e+00> : vector<16xf32>
    %210 = vector.multi_reduction <add>, %205, %cst_94 [1] : vector<16x32xf32> to vector<16xf32>
    %211 = vector.shape_cast %210 : vector<16xf32> to vector<16x1xf32>
    %cst_95 = arith.constant 3.200000e+01 : f32
    %212 = vector.broadcast %cst_95 : f32 to vector<16x1xf32>
    %213 = arith.divf %211, %212 : vector<16x1xf32>
    %214 = vector.broadcast %213 : vector<16x1xf32> to vector<16x32xf32>
    %215 = arith.subf %205, %214 : vector<16x32xf32>
    %216 = arith.mulf %215, %215 : vector<16x32xf32>
    %cst_96 = arith.constant dense<0.000000e+00> : vector<16xf32>
    %217 = vector.multi_reduction <add>, %216, %cst_96 [1] : vector<16x32xf32> to vector<16xf32>
    %218 = vector.shape_cast %217 : vector<16xf32> to vector<16x1xf32>
    %cst_97 = arith.constant 3.200000e+01 : f32
    %219 = vector.broadcast %cst_97 : f32 to vector<16x1xf32>
    %220 = arith.divf %218, %219 : vector<16x1xf32>
    %cst_98 = arith.constant 9.99999974E-6 : f32
    %221 = vector.broadcast %cst_98 : f32 to vector<16x1xf32>
    %222 = arith.addf %220, %221 : vector<16x1xf32>
    %223 = math.rsqrt %222 : vector<16x1xf32>
    %224 = vector.broadcast %213 : vector<16x1xf32> to vector<16x32xf32>
    %225 = arith.subf %205, %224 : vector<16x32xf32>
    %226 = vector.broadcast %223 : vector<16x1xf32> to vector<16x32xf32>
    %227 = arith.mulf %225, %226 : vector<16x32xf32>
    %228 = vector.broadcast %207 : vector<1x32xf32> to vector<16x32xf32>
    %229 = arith.mulf %227, %228 : vector<16x32xf32>
    %230 = vector.broadcast %209 : vector<1x32xf32> to vector<16x32xf32>
    %231 = arith.addf %229, %230 : vector<16x32xf32>
    %c0_99 = arith.constant 0 : index
    %c0_100 = arith.constant 0 : index
    %232 = vector.load %arg12[%c0_99, %c0_100] : memref<16x32xf32, #tpu.memory_space<vmem>>, vector<16x32xf32>
    tpu.vector_store %arg12[%c0_99, %c0_100], %231 {strides = array<i32>} : memref<16x32xf32, #tpu.memory_space<vmem>>, vector<16x32xf32>,
    return
  }
}

</mosaic_0001>

<llo_original>
// kernel: tpu_custom_call.1
$region0: #{tpu_custom_call.1}
  #allocation0 [shape = 'u32[]', space=smem, size = 0x4, offset = 0x4, fixed_abs, tag = 'smem constant byte address 0x4 - core index']
  #allocation1 [shape = 'u32[72,128]{1,0:T(1,128)}', space=vmem, size = 0x9000, scoped, tag = 'internal scratch']
  %s0 = inlined_call_operand.hbm [shape: f32[16,32], index: 0, kind: input, shape index: {}]
  %s1 = inlined_call_operand.vmem [shape: f32[64,64], index: 1, kind: input, shape index: {}]
  %s2 = inlined_call_operand.vmem [shape: f32[2,32,128], index: 2, kind: input, shape index: {}]
  %s3 = inlined_call_operand.vmem [shape: f32[2,1,128], index: 3, kind: input, shape index: {}]
  %s4 = inlined_call_operand.hbm [shape: f32[2,1,32], index: 4, kind: input, shape index: {}]
  %s5 = inlined_call_operand.hbm [shape: f32[2,1,32], index: 5, kind: input, shape index: {}]
  %s6 = inlined_call_operand.vmem [shape: f32[2,32,64], index: 6, kind: input, shape index: {}]
  %s7 = inlined_call_operand.vmem [shape: f32[2,1,64], index: 7, kind: input, shape index: {}]
  %s8 = inlined_call_operand.vmem [shape: f32[2,64,32], index: 8, kind: input, shape index: {}]
  %s9 = inlined_call_operand.vmem [shape: f32[2,1,32], index: 9, kind: input, shape index: {}]
  %s10 = inlined_call_operand.vmem [shape: f32[2,1,32], index: 10, kind: input, shape index: {}]
  %s11 = inlined_call_operand.hbm [shape: f32[2,1,32], index: 11, kind: input, shape index: {}]
  %s12 = inlined_call_operand.hbm [shape: f32[16,32], index: 12, kind: output, shape index: {}]
  %s13 = sld [smem:[#allocation0]]
  $region74: #{tpu_custom_call.1} parent=0
    _
  %s15 = ssub.s32 1, %s13
  %s16 = scalar_select 0, %s15, %s13
  $region1: #{tpu_custom_call.1} parent=0
    #allocation2 [shape = 'u8[8192]{0}', space=vmem, size = 0x2000, scoped, tag = 'input window, operand 0, single buffered']
    #allocation3 [shape = 's32[1]{0}', space=sflag, size = 0x4, scoped, tag = 'scoped memory for tpu_custom_call.1']
    #allocation4 [shape = 's32[1]{0}', space=sflag, size = 0x4, scoped, tag = 'scoped memory for tpu_custom_call.1']
    #allocation5 [shape = 'u8[1024]{0}', space=vmem, size = 0x400, scoped, tag = 'input window, operand 4, single buffered']
    #allocation6 [shape = 's32[1]{0}', space=sflag, size = 0x4, scoped, tag = 'scoped memory for tpu_custom_call.1']
    #allocation7 [shape = 'u8[1024]{0}', space=vmem, size = 0x400, scoped, tag = 'input window, operand 5, single buffered']
    #allocation8 [shape = 'u8[1024]{0}', space=vmem, size = 0x400, scoped, tag = 'input window, operand 11, single buffered']
    #allocation9 [shape = 's32[1]{0}', space=sflag, size = 0x4, scoped, tag = 'scoped memory for tpu_custom_call.1']
    #allocation10 [shape = 'u8[8192]{0}', space=vmem, size = 0x2000, scoped, tag = 'output window, operand 0, single buffered']
    %17 = vsyncpa [#allocation3], 0
    %18 = vsyncpa [#allocation6], 0
    %19 = vsyncpa [#allocation9], 0
    %20 = vsyncpa [#allocation4], 0
    // Predicated region
    $region2: #{tpu_custom_call.1} parent=1 // pred_check
      _
    $region3: #{tpu_custom_call.1} parent=1 // pred_check_branch
      %22 = sbr.rel (0) target = $region5
    $region4: #{tpu_custom_call.1} parent=1 // pred_region
      %24 = vsyncadd [#allocation3], 0
      %s25 = sshll.u32 %s0, 4
      %s26 = int_to_ptr.hbm [resolvable:$true] %s25
      %s27 = sshll.u32 [#allocation2], 4
      %s28 = int_to_ptr.vmem [resolvable:$true] %s27
      %33 = dma.hbm_to_vmem [thread:$0]  %s26, 256, %s28, [#allocation3], 128, 128, 8
    $region5: #{tpu_custom_call.1} parent=1 // pred_fallthru
      _
    // Predicated region
    $region6: #{tpu_custom_call.1} parent=1 // pred_check
      _
    $region7: #{tpu_custom_call.1} parent=1 // pred_check_branch
      %35 = sbr.rel (0) target = $region9
    $region8: #{tpu_custom_call.1} parent=1 // pred_region
      _
    $region9: #{tpu_custom_call.1} parent=1 // pred_fallthru
      _
    // Predicated region
    $region10: #{tpu_custom_call.1} parent=1 // pred_check
      _
    $region11: #{tpu_custom_call.1} parent=1 // pred_check_branch
      %37 = sbr.rel (0) target = $region13
    $region12: #{tpu_custom_call.1} parent=1 // pred_region
      _
    $region13: #{tpu_custom_call.1} parent=1 // pred_fallthru
      _
    // Predicated region
    $region14: #{tpu_custom_call.1} parent=1 // pred_check
      _
    $region15: #{tpu_custom_call.1} parent=1 // pred_check_branch
      %39 = sbr.rel (0) target = $region17
    $region16: #{tpu_custom_call.1} parent=1 // pred_region
      _
    $region17: #{tpu_custom_call.1} parent=1 // pred_fallthru
      _
    // Predicated region
    $region18: #{tpu_custom_call.1} parent=1 // pred_check
      _
    $region19: #{tpu_custom_call.1} parent=1 // pred_check_branch
      %41 = sbr.rel (0) target = $region21
    $region20: #{tpu_custom_call.1} parent=1 // pred_region
      %43 = vsyncadd [#allocation6], 0
      %s44 = sshll.u32 %s4, 4
      %s45 = int_to_ptr.hbm [resolvable:$true] %s44
      %s46 = sshll.u32 [#allocation5], 4
      %s47 = int_to_ptr.vmem [resolvable:$true] %s46
      %52 = dma.hbm_to_vmem [thread:$0]  %s45, 32, %s47, [#allocation6], 16, 16, 1
    $region21: #{tpu_custom_call.1} parent=1 // pred_fallthru
      _
    // Predicated region
    $region22: #{tpu_custom_call.1} parent=1 // pred_check
      _
    $region23: #{tpu_custom_call.1} parent=1 // pred_check_branch
      %54 = sbr.rel (0) target = $region25
    $region24: #{tpu_custom_call.1} parent=1 // pred_region
      %56 = vsyncadd [#allocation6], 0
      %s57 = sshll.u32 %s5, 4
      %s58 = int_to_ptr.hbm [resolvable:$true] %s57
      %s59 = sshll.u32 [#allocation7], 4
      %s60 = int_to_ptr.vmem [resolvable:$true] %s59
      %65 = dma.hbm_to_vmem [thread:$0]  %s58, 32, %s60, [#allocation6], 16, 16, 1
    $region25: #{tpu_custom_call.1} parent=1 // pred_fallthru
      _
    // Predicated region
    $region26: #{tpu_custom_call.1} parent=1 // pred_check
      _
    $region27: #{tpu_custom_call.1} parent=1 // pred_check_branch
      %67 = sbr.rel (0) target = $region29
    $region28: #{tpu_custom_call.1} parent=1 // pred_region
      _
    $region29: #{tpu_custom_call.1} parent=1 // pred_fallthru
      _
    // Predicated region
    $region30: #{tpu_custom_call.1} parent=1 // pred_check
      _
    $region31: #{tpu_custom_call.1} parent=1 // pred_check_branch
      %69 = sbr.rel (0) target = $region33
    $region32: #{tpu_custom_call.1} parent=1 // pred_region
      _
    $region33: #{tpu_custom_call.1} parent=1 // pred_fallthru
      _
    // Predicated region
    $region34: #{tpu_custom_call.1} parent=1 // pred_check
      _
    $region35: #{tpu_custom_call.1} parent=1 // pred_check_branch
      %71 = sbr.rel (0) target = $region37
    $region36: #{tpu_custom_call.1} parent=1 // pred_region
      _
    $region37: #{tpu_custom_call.1} parent=1 // pred_fallthru
      _
    // Predicated region
    $region38: #{tpu_custom_call.1} parent=1 // pred_check
      _
    $region39: #{tpu_custom_call.1} parent=1 // pred_check_branch
      %73 = sbr.rel (0) target = $region41
    $region40: #{tpu_custom_call.1} parent=1 // pred_region
      _
    $region41: #{tpu_custom_call.1} parent=1 // pred_fallthru
      _
    // Predicated region
    $region42: #{tpu_custom_call.1} parent=1 // pred_check
      _
    $region43: #{tpu_custom_call.1} parent=1 // pred_check_branch
      %75 = sbr.rel (0) target = $region45
    $region44: #{tpu_custom_call.1} parent=1 // pred_region
      _
    $region45: #{tpu_custom_call.1} parent=1 // pred_fallthru
      _
    // Predicated region
    $region46: #{tpu_custom_call.1} parent=1 // pred_check
      _
    $region47: #{tpu_custom_call.1} parent=1 // pred_check_branch
      %77 = sbr.rel (0) target = $region49
    $region48: #{tpu_custom_call.1} parent=1 // pred_region
      %79 = vsyncadd [#allocation9], 0
      %s80 = sshll.u32 %s11, 4
      %s81 = int_to_ptr.hbm [resolvable:$true] %s80
      %s82 = sshll.u32 [#allocation8], 4
      %s83 = int_to_ptr.vmem [resolvable:$true] %s82
      %88 = dma.hbm_to_vmem [thread:$0]  %s81, 32, %s83, [#allocation9], 16, 16, 1
    $region49: #{tpu_custom_call.1} parent=1 // pred_fallthru
      _
    // Predicated region
    $region50: #{tpu_custom_call.1} parent=1 // pred_check
      _
    $region51: #{tpu_custom_call.1} parent=1 // pred_check_branch
      %90 = sbr.rel (0) target = $region53
    $region52: #{tpu_custom_call.1} parent=1 // pred_region
      %92 = dma.done [#allocation3], 256
    $region53: #{tpu_custom_call.1} parent=1 // pred_fallthru
      _
    // Predicated region
    $region54: #{tpu_custom_call.1} parent=1 // pred_check
      _
    $region55: #{tpu_custom_call.1} parent=1 // pred_check_branch
      %94 = sbr.rel (0) target = $region57
    $region56: #{tpu_custom_call.1} parent=1 // pred_region
      %96 = dma.done [#allocation6], 32
    $region57: #{tpu_custom_call.1} parent=1 // pred_fallthru
      _
    // Predicated region
    $region58: #{tpu_custom_call.1} parent=1 // pred_check
      _
    $region59: #{tpu_custom_call.1} parent=1 // pred_check_branch
      %98 = sbr.rel (0) target = $region61
    $region60: #{tpu_custom_call.1} parent=1 // pred_region
      %100 = dma.done [#allocation6], 32
    $region61: #{tpu_custom_call.1} parent=1 // pred_fallthru
      _
    // Predicated region
    $region62: #{tpu_custom_call.1} parent=1 // pred_check
      _
    $region63: #{tpu_custom_call.1} parent=1 // pred_check_branch
      %102 = sbr.rel (0) target = $region65
    $region64: #{tpu_custom_call.1} parent=1 // pred_region
      %104 = dma.done [#allocation9], 32
    $region65: #{tpu_custom_call.1} parent=1 // pred_fallthru
      _
    %v105 = vld [vmem:[%s1] sm:$0xff]
    %v106 = vld [vmem:[%s1 + $0x8] sm:$0xff]
    %v107 = vld [vmem:[%s1 + $0x10] sm:$0xff]
    %v108 = vld [vmem:[%s1 + $0x18] sm:$0xff]
    %v109 = vld [vmem:[%s1 + $0x20] sm:$0xff]
    %v110 = vld [vmem:[%s1 + $0x28] sm:$0xff]
    %v111 = vld [vmem:[%s1 + $0x30] sm:$0xff]
    %v112 = vld [vmem:[%s1 + $0x38] sm:$0xff]
    %v113 = vld [vmem:[#allocation2] sm:$0xff]
    %v114 = vld [vmem:[#allocation2 + $0x8] sm:$0xff]
    %v115 = vld [vmem:[%s2] sm:$0xff]
    %v116 = vld [vmem:[%s2 + $0x8] sm:$0xff]
    %v117 = vld [vmem:[%s2 + $0x10] sm:$0xff]
    %v118 = vld [vmem:[%s2 + $0x18] sm:$0xff]
    %v119 = vld [vmem:[%s3] sm:$0x1]
    %v121 = vperm.slane %v119, 0
    %vm123 = vcmask 261120
    %v125 = vsel %vm123, %v113, 0
    %v128 = vsel %vm123, %v114, 0
    %130 = vmatpush.msra.mxu0 0.0
    %131 = vmatpush.msra.mxu0 0.0
    %132 = vmatpush.msra.mxu0 0.0
    %133 = vmatpush.msra.mxu0 0.0
    %134 = vmatpush.msra.mxu0 0.0
    %135 = vmatpush.msra.mxu0 0.0
    %136 = vmatpush.msra.mxu0 0.0
    %137 = vmatpush.msra.mxu0 0.0
    %138 = vmatpush.msra.mxu0 0.0
    %139 = vmatpush.msra.mxu0 0.0
    %140 = vmatpush.msra.mxu0 0.0
    %141 = vmatpush.msra.mxu0 0.0
    %142 = vmatpush.msra.mxu0 %v118
    %143 = vmatpush.msra.mxu0 %v117
    %144 = vmatpush.msra.mxu0 %v116
    %145 = vmatpush.msra.mxu0 %v115
    %146 = vmatmul.f32.gmra.mxu0 %v125
    %v147 = vpop.f32.mrf.mxu0
    %v148 = vadd.f32 %v121, %v147
    %149 = vmatmul.f32.gmra.mxu0 %v128
    %v150 = vpop.f32.mrf.mxu0
    %v151 = vadd.f32 %v121, %v150
    %152 = vdwg.mxu0
    %155 = vrot.lane.b32.xlu0 %v148, 120
    %v156 = vpop.permute.xlu0 %155
    %157 = vrot.lane.b32.xlu0 %v151, 120
    %v158 = vpop.permute.xlu0 %157
    %159 = vrot.lane.b32.xlu0 %v148, 112
    %v160 = vpop.permute.xlu0 %159
    %161 = vrot.lane.b32.xlu0 %v151, 112
    %v162 = vpop.permute.xlu0 %161
    %163 = vrot.lane.b32.xlu0 %v148, 104
    %v164 = vpop.permute.xlu0 %163
    %165 = vrot.lane.b32.xlu0 %v151, 104
    %v166 = vpop.permute.xlu0 %165
    %167 = vrot.lane.b32.xlu0 %v148, 96
    %v168 = vpop.permute.xlu0 %167
    %169 = vrot.lane.b32.xlu0 %v151, 96
    %v170 = vpop.permute.xlu0 %169
    %171 = vrot.lane.b32.xlu0 %v156, 96
    %v172 = vpop.permute.xlu0 %171
    %173 = vrot.lane.b32.xlu0 %v158, 96
    %v174 = vpop.permute.xlu0 %173
    %175 = vrot.lane.b32.xlu0 %v160, 96
    %v176 = vpop.permute.xlu0 %175
    %177 = vrot.lane.b32.xlu0 %v162, 96
    %v178 = vpop.permute.xlu0 %177
    %179 = vrot.lane.b32.xlu0 %v164, 96
    %v180 = vpop.permute.xlu0 %179
    %181 = vrot.lane.b32.xlu0 %v166, 96
    %v182 = vpop.permute.xlu0 %181
    %vm183 = vcmask 64512
    %v184 = vsel %vm183, %v148, 0
    %v186 = vsel %vm183, %v151, 0
    %v188 = vsel %vm183, %v156, 0
    %v190 = vsel %vm183, %v158, 0
    %v192 = vsel %vm183, %v160, 0
    %v194 = vsel %vm183, %v162, 0
    %v196 = vsel %vm183, %v164, 0
    %v198 = vsel %vm183, %v166, 0
    %v200 = vsel %vm183, %v168, 0
    %v202 = vsel %vm183, %v170, 0
    %v204 = vsel %vm183, %v172, 0
    %v206 = vsel %vm183, %v174, 0
    %v208 = vsel %vm183, %v176, 0
    %v210 = vsel %vm183, %v178, 0
    %v212 = vsel %vm183, %v180, 0
    %v214 = vsel %vm183, %v182, 0
    %216 = vmatpush.xpose.msra.mxu0 0.0
    %217 = vmatpush.xpose.msra.mxu0 0.0
    %218 = vmatpush.xpose.msra.mxu0 0.0
    %219 = vmatpush.xpose.msra.mxu0 0.0
    %220 = vmatpush.xpose.msra.mxu0 0.0
    %221 = vmatpush.xpose.msra.mxu0 0.0
    %222 = vmatpush.xpose.msra.mxu0 0.0
    %223 = vmatpush.xpose.msra.mxu0 0.0
    %224 = vmatpush.xpose.msra.mxu0 %v214
    %225 = vmatpush.xpose.msra.mxu0 %v212
    %226 = vmatpush.xpose.msra.mxu0 %v210
    %227 = vmatpush.xpose.msra.mxu0 %v208
    %228 = vmatpush.xpose.msra.mxu0 %v206
    %229 = vmatpush.xpose.msra.mxu0 %v204
    %230 = vmatpush.xpose.msra.mxu0 %v202
    %231 = vmatpush.xpose.msra.mxu0 %v200
    %232 = vmatmul.f32.gmra.mxu0 %v184
    %v233 = vpop.f32.mrf.mxu0
    %v234 = vadd.f32 %v105, %v233
    %235 = vmatmul.f32.gmra.mxu0 %v186
    %v236 = vpop.f32.mrf.mxu0
    %v237 = vadd.f32 %v106, %v236
    %238 = vmatmul.f32.gmra.mxu0 %v188
    %v239 = vpop.f32.mrf.mxu0
    %v240 = vadd.f32 %v107, %v239
    %241 = vmatmul.f32.gmra.mxu0 %v190
    %v242 = vpop.f32.mrf.mxu0
    %v243 = vadd.f32 %v108, %v242
    %244 = vmatmul.f32.gmra.mxu0 %v192
    %v245 = vpop.f32.mrf.mxu0
    %v246 = vadd.f32 %v109, %v245
    %247 = vmatmul.f32.gmra.mxu0 %v194
    %v248 = vpop.f32.mrf.mxu0
    %v249 = vadd.f32 %v110, %v248
    %250 = vmatmul.f32.gmra.mxu0 %v196
    %v251 = vpop.f32.mrf.mxu0
    %v252 = vadd.f32 %v111, %v251
    %253 = vmatmul.f32.gmra.mxu0 %v198
    %v254 = vpop.f32.mrf.mxu0
    %v255 = vadd.f32 %v112, %v254
    %256 = vdwg.mxu0
    %vm257 = vcmask 523264
    %v258 = vsel %vm257, %v234, -inf
    %259 = vmax.xlane.f32.xlu0 %v258
    %v260 = vpop.xlane.xlu0 %259
    %v261 = vsel %vm257, %v237, -inf
    %262 = vmax.xlane.f32.xlu0 %v261
    %v263 = vpop.xlane.xlu0 %262
    %v264 = vsel %vm257, %v240, -inf
    %265 = vmax.xlane.f32.xlu0 %v264
    %v266 = vpop.xlane.xlu0 %265
    %v267 = vsel %vm257, %v243, -inf
    %268 = vmax.xlane.f32.xlu0 %v267
    %v269 = vpop.xlane.xlu0 %268
    %v270 = vsel %vm257, %v246, -inf
    %271 = vmax.xlane.f32.xlu0 %v270
    %v272 = vpop.xlane.xlu0 %271
    %v273 = vsel %vm257, %v249, -inf
    %274 = vmax.xlane.f32.xlu0 %v273
    %v275 = vpop.xlane.xlu0 %274
    %v276 = vsel %vm257, %v252, -inf
    %277 = vmax.xlane.f32.xlu0 %v276
    %v278 = vpop.xlane.xlu0 %277
    %v279 = vsel %vm257, %v255, -inf
    %280 = vmax.xlane.f32.xlu0 %v279
    %v281 = vpop.xlane.xlu0 %280
    %v282 = vsub.f32 %v234, %v260
    %v283 = vsub.f32 %v237, %v263
    %v284 = vsub.f32 %v240, %v266
    %v285 = vsub.f32 %v243, %v269
    %v286 = vsub.f32 %v246, %v272
    %v287 = vsub.f32 %v249, %v275
    %v288 = vsub.f32 %v252, %v278
    %v289 = vsub.f32 %v255, %v281
    %v290 = vmul.f32 %v282, 1.442695
    %v291 = vpow.pop %v290
    %v292 = vmul.f32 %v283, 1.442695
    %v293 = vpow.pop %v292
    %v294 = vmul.f32 %v284, 1.442695
    %v295 = vpow.pop %v294
    %v296 = vmul.f32 %v285, 1.442695
    %v297 = vpow.pop %v296
    %v298 = vmul.f32 %v286, 1.442695
    %v299 = vpow.pop %v298
    %v300 = vmul.f32 %v287, 1.442695
    %v301 = vpow.pop %v300
    %v302 = vmul.f32 %v288, 1.442695
    %v303 = vpow.pop %v302
    %v304 = vmul.f32 %v289, 1.442695
    %v305 = vpow.pop %v304
    %v306 = vsel %vm257, %v291, 0.0
    %307 = vadd.xlane.f32.xlu0 %v306
    %v308 = vpop.xlane.xlu0 %307
    %v309 = vsel %vm257, %v293, 0.0
    %310 = vadd.xlane.f32.xlu0 %v309
    %v311 = vpop.xlane.xlu0 %310
    %v312 = vsel %vm257, %v295, 0.0
    %313 = vadd.xlane.f32.xlu0 %v312
    %v314 = vpop.xlane.xlu0 %313
    %v315 = vsel %vm257, %v297, 0.0
    %316 = vadd.xlane.f32.xlu0 %v315
    %v317 = vpop.xlane.xlu0 %316
    %v318 = vsel %vm257, %v299, 0.0
    %319 = vadd.xlane.f32.xlu0 %v318
    %v320 = vpop.xlane.xlu0 %319
    %v321 = vsel %vm257, %v301, 0.0
    %322 = vadd.xlane.f32.xlu0 %v321
    %v323 = vpop.xlane.xlu0 %322
    %v324 = vsel %vm257, %v303, 0.0
    %325 = vadd.xlane.f32.xlu0 %v324
    %v326 = vpop.xlane.xlu0 %325
    %v327 = vsel %vm257, %v305, 0.0
    %328 = vadd.xlane.f32.xlu0 %v327
    %v329 = vpop.xlane.xlu0 %328
    %v330 = vrcp.pop %v308
    %v331 = vrcp.pop %v311
    %v332 = vrcp.pop %v314
    %v333 = vrcp.pop %v317
    %v334 = vrcp.pop %v320
    %v335 = vrcp.pop %v323
    %v336 = vrcp.pop %v326
    %v337 = vrcp.pop %v329
    %v338 = vmul.f32 %v291, %v330
    %v339 = vmul.f32 %v293, %v331
    %v340 = vmul.f32 %v295, %v332
    %v341 = vmul.f32 %v297, %v333
    %v342 = vmul.f32 %v299, %v334
    %v343 = vmul.f32 %v301, %v335
    %v344 = vmul.f32 %v303, %v336
    %v345 = vmul.f32 %v305, %v337
    %346 = vrot.lane.b32.xlu0 %v148, 64
    %v347 = vpop.permute.xlu0 %346
    %348 = vrot.lane.b32.xlu0 %v151, 64
    %v349 = vpop.permute.xlu0 %348
    %350 = vrot.lane.b32.xlu0 %v156, 64
    %v351 = vpop.permute.xlu0 %350
    %352 = vrot.lane.b32.xlu0 %v158, 64
    %v353 = vpop.permute.xlu0 %352
    %354 = vrot.lane.b32.xlu0 %v160, 64
    %v355 = vpop.permute.xlu0 %354
    %356 = vrot.lane.b32.xlu0 %v162, 64
    %v357 = vpop.permute.xlu0 %356
    %358 = vrot.lane.b32.xlu0 %v164, 64
    %v359 = vpop.permute.xlu0 %358
    %360 = vrot.lane.b32.xlu0 %v166, 64
    %v361 = vpop.permute.xlu0 %360
    %v371 = vsel %vm257, %v338, 0
    %v374 = vsel %vm257, %v339, 0
    %v377 = vsel %vm257, %v340, 0
    %v380 = vsel %vm257, %v341, 0
    %v383 = vsel %vm257, %v342, 0
    %v386 = vsel %vm257, %v343, 0
    %v389 = vsel %vm257, %v344, 0
    %v392 = vsel %vm257, %v345, 0
    %394 = vmatpush.msra.mxu0 0.0
    %395 = vmatpush.msra.mxu0 0.0
    %396 = vmatpush.msra.mxu0 0.0
    %397 = vmatpush.msra.mxu0 0.0
    %398 = vmatpush.msra.mxu0 0.0
    %399 = vmatpush.msra.mxu0 0.0
    %400 = vmatpush.msra.mxu0 0.0
    %401 = vmatpush.msra.mxu0 0.0
    %402 = vmatpush.msra.mxu0 %v361
    %403 = vmatpush.msra.mxu0 %v359
    %404 = vmatpush.msra.mxu0 %v357
    %405 = vmatpush.msra.mxu0 %v355
    %406 = vmatpush.msra.mxu0 %v353
    %407 = vmatpush.msra.mxu0 %v351
    %408 = vmatpush.msra.mxu0 %v349
    %409 = vmatpush.msra.mxu0 %v347
    %410 = vmatmul.f32.gmra.mxu0 %v371
    %v411 = vpop.f32.mrf.mxu0
    %v412 = vadd.f32 0.0, %v411
    %413 = vmatmul.f32.gmra.mxu0 %v374
    %v414 = vpop.f32.mrf.mxu0
    %v415 = vadd.f32 0.0, %v414
    %416 = vmatmul.f32.gmra.mxu0 %v377
    %v417 = vpop.f32.mrf.mxu0
    %v418 = vadd.f32 0.0, %v417
    %419 = vmatmul.f32.gmra.mxu0 %v380
    %v420 = vpop.f32.mrf.mxu0
    %v421 = vadd.f32 0.0, %v420
    %422 = vmatmul.f32.gmra.mxu0 %v383
    %v423 = vpop.f32.mrf.mxu0
    %v424 = vadd.f32 0.0, %v423
    %425 = vmatmul.f32.gmra.mxu0 %v386
    %v426 = vpop.f32.mrf.mxu0
    %v427 = vadd.f32 0.0, %v426
    %428 = vmatmul.f32.gmra.mxu0 %v389
    %v429 = vpop.f32.mrf.mxu0
    %v430 = vadd.f32 0.0, %v429
    %431 = vmatmul.f32.gmra.mxu0 %v392
    %v432 = vpop.f32.mrf.mxu0
    %v433 = vadd.f32 0.0, %v432
    %434 = vdwg.mxu0
    %437 = vrot.lane.b32.xlu0 %v418, 8
    %v438 = vpop.permute.xlu0 %437
    %439 = vrot.lane.b32.xlu0 %v421, 8
    %v440 = vpop.permute.xlu0 %439
    %445 = vrot.lane.b32.xlu0 %v424, 16
    %v446 = vpop.permute.xlu0 %445
    %447 = vrot.lane.b32.xlu0 %v427, 16
    %v448 = vpop.permute.xlu0 %447
    %453 = vrot.lane.b32.xlu0 %v430, 24
    %v454 = vpop.permute.xlu0 %453
    %455 = vrot.lane.b32.xlu0 %v433, 24
    %v456 = vpop.permute.xlu0 %455
    %v459 = vsel %vm183, %v412, %v438
    %v460 = vsel %vm183, %v415, %v440
    %vm461 = vcmask 130048
    %v462 = vsel %vm461, %v459, %v446
    %v463 = vsel %vm461, %v460, %v448
    %vm464 = vcmask 195584
    %v465 = vsel %vm464, %v462, %v454
    %v466 = vsel %vm464, %v463, %v456
    %471 = vrot.lane.b32.xlu0 %v115, 32
    %v472 = vpop.permute.xlu0 %471
    %473 = vrot.lane.b32.xlu0 %v116, 32
    %v474 = vpop.permute.xlu0 %473
    %475 = vrot.lane.b32.xlu0 %v117, 32
    %v476 = vpop.permute.xlu0 %475
    %477 = vrot.lane.b32.xlu0 %v118, 32
    %v478 = vpop.permute.xlu0 %477
    %483 = vrot.lane.b32.xlu0 %v121, 32
    %v484 = vpop.permute.xlu0 %483
    %v487 = vsel %vm123, %v465, 0
    %v490 = vsel %vm123, %v466, 0
    %492 = vmatpush.msra.mxu0 0.0
    %493 = vmatpush.msra.mxu0 0.0
    %494 = vmatpush.msra.mxu0 0.0
    %495 = vmatpush.msra.mxu0 0.0
    %496 = vmatpush.msra.mxu0 0.0
    %497 = vmatpush.msra.mxu0 0.0
    %498 = vmatpush.msra.mxu0 0.0
    %499 = vmatpush.msra.mxu0 0.0
    %500 = vmatpush.msra.mxu0 0.0
    %501 = vmatpush.msra.mxu0 0.0
    %502 = vmatpush.msra.mxu0 0.0
    %503 = vmatpush.msra.mxu0 0.0
    %504 = vmatpush.msra.mxu0 %v478
    %505 = vmatpush.msra.mxu0 %v476
    %506 = vmatpush.msra.mxu0 %v474
    %507 = vmatpush.msra.mxu0 %v472
    %508 = vmatmul.f32.gmra.mxu0 %v487
    %v509 = vpop.f32.mrf.mxu0
    %v510 = vadd.f32 %v484, %v509
    %511 = vmatmul.f32.gmra.mxu0 %v490
    %v512 = vpop.f32.mrf.mxu0
    %v513 = vadd.f32 %v484, %v512
    %514 = vdwg.mxu0
    %v515 = vadd.f32 %v113, %v510
    %v516 = vadd.f32 %v114, %v513
    %v517 = vld [vmem:[#allocation5] sm:$0x1]
    %v518 = vld [vmem:[#allocation7] sm:$0x1]
    %v519 = vsel %vm123, %v515, 0.0
    %520 = vadd.xlane.f32.xlu0 %v519
    %v521 = vpop.xlane.xlu0 %520
    %v522 = vsel %vm123, %v516, 0.0
    %523 = vadd.xlane.f32.xlu0 %v522
    %v524 = vpop.xlane.xlu0 %523
    %v525 = vrcp.pop 32.0
    %v526 = vmul.f32 32.0, %v525
    %v527 = vsub.f32 1.0, %v526
    %v528 = vmul.f32 %v525, %v527
    %v529 = vadd.f32 %v525, %v528
    %vm530 = vweird.f32 %v525
    %v531 = vsel %vm530, %v525, %v529
    %v532 = vmul.f32 %v521, %v531
    %v533 = vmul.f32 %v524, %v531
    %v534 = vsub.f32 %v515, %v532
    %v535 = vsub.f32 %v516, %v533
    %v536 = vmul.f32 %v534, %v534
    %v537 = vmul.f32 %v535, %v535
    %v538 = vsel %vm123, %v536, 0.0
    %539 = vadd.xlane.f32.xlu0 %v538
    %v540 = vpop.xlane.xlu0 %539
    %v541 = vsel %vm123, %v537, 0.0
    %542 = vadd.xlane.f32.xlu0 %v541
    %v543 = vpop.xlane.xlu0 %542
    %v544 = vmul.f32 %v540, %v531
    %v545 = vmul.f32 %v543, %v531
    %v546 = vadd.f32 %v544, 1e-05
    %v547 = vadd.f32 %v545, 1e-05
    %v548 = vrsqrt.pop %v546
    %v549 = vmul.f32 %v548, %v546
    %v550 = vmul.f32 %v549, %v548
    %v551 = vmul.f32 0.5, %v550
    %v552 = vsub.f32 1.5, %v551
    %v553 = vmul.f32 %v548, %v552
    %vm554 = vweird.f32 %v546
    %vm555 = vweird.f32 %v548
    %vm556 = vmor %vm554, %vm555
    %v557 = vsel %vm556, %v548, %v553
    %v558 = vrsqrt.pop %v547
    %v559 = vmul.f32 %v558, %v547
    %v560 = vmul.f32 %v559, %v558
    %v561 = vmul.f32 0.5, %v560
    %v562 = vsub.f32 1.5, %v561
    %v563 = vmul.f32 %v558, %v562
    %vm564 = vweird.f32 %v547
    %vm565 = vweird.f32 %v558
    %vm566 = vmor %vm564, %vm565
    %v567 = vsel %vm566, %v558, %v563
    %v568 = vmul.f32 %v534, %v557
    %v569 = vmul.f32 %v535, %v567
    %v571 = vperm.slane %v517, 0
    %v573 = vmul.f32 %v568, %v571
    %v574 = vmul.f32 %v569, %v571
    %v576 = vperm.slane %v518, 0
    %v578 = vadd.f32 %v573, %v576
    %v579 = vadd.f32 %v574, %v576
    %v580 = vld [vmem:[%s6] sm:$0xff]
    %v581 = vld [vmem:[%s6 + $0x8] sm:$0xff]
    %v582 = vld [vmem:[%s6 + $0x10] sm:$0xff]
    %v583 = vld [vmem:[%s6 + $0x18] sm:$0xff]
    %v584 = vld [vmem:[%s7] sm:$0x1]
    %v586 = vperm.slane %v584, 0
    %v589 = vsel %vm123, %v578, 0
    %v592 = vsel %vm123, %v579, 0
    %594 = vmatpush.msra.mxu0 0.0
    %595 = vmatpush.msra.mxu0 0.0
    %596 = vmatpush.msra.mxu0 0.0
    %597 = vmatpush.msra.mxu0 0.0
    %598 = vmatpush.msra.mxu0 0.0
    %599 = vmatpush.msra.mxu0 0.0
    %600 = vmatpush.msra.mxu0 0.0
    %601 = vmatpush.msra.mxu0 0.0
    %602 = vmatpush.msra.mxu0 0.0
    %603 = vmatpush.msra.mxu0 0.0
    %604 = vmatpush.msra.mxu0 0.0
    %605 = vmatpush.msra.mxu0 0.0
    %606 = vmatpush.msra.mxu0 %v583
    %607 = vmatpush.msra.mxu0 %v582
    %608 = vmatpush.msra.mxu0 %v581
    %609 = vmatpush.msra.mxu0 %v580
    %610 = vmatmul.f32.gmra.mxu0 %v589
    %v611 = vpop.f32.mrf.mxu0
    %v612 = vadd.f32 %v586, %v611
    %613 = vmatmul.f32.gmra.mxu0 %v592
    %v614 = vpop.f32.mrf.mxu0
    %v615 = vadd.f32 %v586, %v614
    %616 = vdwg.mxu0
    %v617 = vmax.f32 %v612, 0.0
    %v618 = vmax.f32 %v615, 0.0
    %v619 = vld [vmem:[%s8] sm:$0xff]
    %v620 = vld [vmem:[%s8 + $0x8] sm:$0xff]
    %v621 = vld [vmem:[%s8 + $0x10] sm:$0xff]
    %v622 = vld [vmem:[%s8 + $0x18] sm:$0xff]
    %v623 = vld [vmem:[%s8 + $0x20] sm:$0xff]
    %v624 = vld [vmem:[%s8 + $0x28] sm:$0xff]
    %v625 = vld [vmem:[%s8 + $0x30] sm:$0xff]
    %v626 = vld [vmem:[%s8 + $0x38] sm:$0xff]
    %v627 = vld [vmem:[%s9] sm:$0x1]
    %v629 = vperm.slane %v627, 0
    %v632 = vsel %vm257, %v617, 0
    %v635 = vsel %vm257, %v618, 0
    %637 = vmatpush.msra.mxu0 0.0
    %638 = vmatpush.msra.mxu0 0.0
    %639 = vmatpush.msra.mxu0 0.0
    %640 = vmatpush.msra.mxu0 0.0
    %641 = vmatpush.msra.mxu0 0.0
    %642 = vmatpush.msra.mxu0 0.0
    %643 = vmatpush.msra.mxu0 0.0
    %644 = vmatpush.msra.mxu0 0.0
    %645 = vmatpush.msra.mxu0 %v626
    %646 = vmatpush.msra.mxu0 %v625
    %647 = vmatpush.msra.mxu0 %v624
    %648 = vmatpush.msra.mxu0 %v623
    %649 = vmatpush.msra.mxu0 %v622
    %650 = vmatpush.msra.mxu0 %v621
    %651 = vmatpush.msra.mxu0 %v620
    %652 = vmatpush.msra.mxu0 %v619
    %653 = vmatmul.f32.gmra.mxu0 %v632
    %v654 = vpop.f32.mrf.mxu0
    %v655 = vadd.f32 %v629, %v654
    %656 = vmatmul.f32.gmra.mxu0 %v635
    %v657 = vpop.f32.mrf.mxu0
    %v658 = vadd.f32 %v629, %v657
    %659 = vdwg.mxu0
    %v660 = vadd.f32 %v578, %v655
    %v661 = vadd.f32 %v579, %v658
    %v662 = vld [vmem:[%s10] sm:$0x1]
    %v663 = vld [vmem:[#allocation8] sm:$0x1]
    %v664 = vsel %vm123, %v660, 0.0
    %665 = vadd.xlane.f32.xlu0 %v664
    %v666 = vpop.xlane.xlu0 %665
    %v667 = vsel %vm123, %v661, 0.0
    %668 = vadd.xlane.f32.xlu0 %v667
    %v669 = vpop.xlane.xlu0 %668
    %v670 = vmul.f32 %v666, %v531
    %v671 = vmul.f32 %v669, %v531
    %v672 = vsub.f32 %v660, %v670
    %v673 = vsub.f32 %v661, %v671
    %v674 = vmul.f32 %v672, %v672
    %v675 = vmul.f32 %v673, %v673
    %v676 = vsel %vm123, %v674, 0.0
    %677 = vadd.xlane.f32.xlu0 %v676
    %v678 = vpop.xlane.xlu0 %677
    %v679 = vsel %vm123, %v675, 0.0
    %680 = vadd.xlane.f32.xlu0 %v679
    %v681 = vpop.xlane.xlu0 %680
    %v682 = vmul.f32 %v678, %v531
    %v683 = vmul.f32 %v681, %v531
    %v684 = vadd.f32 %v682, 1e-05
    %v685 = vadd.f32 %v683, 1e-05
    %v686 = vrsqrt.pop %v684
    %v687 = vmul.f32 %v686, %v684
    %v688 = vmul.f32 %v687, %v686
    %v689 = vmul.f32 0.5, %v688
    %v690 = vsub.f32 1.5, %v689
    %v691 = vmul.f32 %v686, %v690
    %vm692 = vweird.f32 %v684
    %vm693 = vweird.f32 %v686
    %vm694 = vmor %vm692, %vm693
    %v695 = vsel %vm694, %v686, %v691
    %v696 = vrsqrt.pop %v685
    %v697 = vmul.f32 %v696, %v685
    %v698 = vmul.f32 %v697, %v696
    %v699 = vmul.f32 0.5, %v698
    %v700 = vsub.f32 1.5, %v699
    %v701 = vmul.f32 %v696, %v700
    %vm702 = vweird.f32 %v685
    %vm703 = vweird.f32 %v696
    %vm704 = vmor %vm702, %vm703
    %v705 = vsel %vm704, %v696, %v701
    %v706 = vmul.f32 %v672, %v695
    %v707 = vmul.f32 %v673, %v705
    %v709 = vperm.slane %v662, 0
    %v711 = vmul.f32 %v706, %v709
    %v712 = vmul.f32 %v707, %v709
    %v714 = vperm.slane %v663, 0
    %v716 = vadd.f32 %v711, %v714
    %v717 = vadd.f32 %v712, %v714
    %s718 = scalar_lea.vmem %s2, 32
    %v719 = vld [vmem:[%s718] sm:$0xff]
    %v720 = vld [vmem:[%s718 + $0x8] sm:$0xff]
    %v721 = vld [vmem:[%s718 + $0x10] sm:$0xff]
    %v722 = vld [vmem:[%s718 + $0x18] sm:$0xff]
    %s723 = scalar_lea.vmem %s3, 1
    %v724 = vld [vmem:[%s723] sm:$0x1]
    %v726 = vperm.slane %v724, 0
    %v729 = vsel %vm123, %v716, 0
    %v732 = vsel %vm123, %v717, 0
    %734 = vmatpush.msra.mxu0 0.0
    %735 = vmatpush.msra.mxu0 0.0
    %736 = vmatpush.msra.mxu0 0.0
    %737 = vmatpush.msra.mxu0 0.0
    %738 = vmatpush.msra.mxu0 0.0
    %739 = vmatpush.msra.mxu0 0.0
    %740 = vmatpush.msra.mxu0 0.0
    %741 = vmatpush.msra.mxu0 0.0
    %742 = vmatpush.msra.mxu0 0.0
    %743 = vmatpush.msra.mxu0 0.0
    %744 = vmatpush.msra.mxu0 0.0
    %745 = vmatpush.msra.mxu0 0.0
    %746 = vmatpush.msra.mxu0 %v722
    %747 = vmatpush.msra.mxu0 %v721
    %748 = vmatpush.msra.mxu0 %v720
    %749 = vmatpush.msra.mxu0 %v719
    %750 = vmatmul.f32.gmra.mxu0 %v729
    %v751 = vpop.f32.mrf.mxu0
    %v752 = vadd.f32 %v726, %v751
    %753 = vmatmul.f32.gmra.mxu0 %v732
    %v754 = vpop.f32.mrf.mxu0
    %v755 = vadd.f32 %v726, %v754
    %756 = vdwg.mxu0
    %759 = vrot.lane.b32.xlu0 %v752, 120
    %v760 = vpop.permute.xlu0 %759
    %761 = vrot.lane.b32.xlu0 %v755, 120
    %v762 = vpop.permute.xlu0 %761
    %763 = vrot.lane.b32.xlu0 %v752, 112
    %v764 = vpop.permute.xlu0 %763
    %765 = vrot.lane.b32.xlu0 %v755, 112
    %v766 = vpop.permute.xlu0 %765
    %767 = vrot.lane.b32.xlu0 %v752, 104
    %v768 = vpop.permute.xlu0 %767
    %769 = vrot.lane.b32.xlu0 %v755, 104
    %v770 = vpop.permute.xlu0 %769
    %771 = vrot.lane.b32.xlu0 %v752, 96
    %v772 = vpop.permute.xlu0 %771
    %773 = vrot.lane.b32.xlu0 %v755, 96
    %v774 = vpop.permute.xlu0 %773
    %775 = vrot.lane.b32.xlu0 %v760, 96
    %v776 = vpop.permute.xlu0 %775
    %777 = vrot.lane.b32.xlu0 %v762, 96
    %v778 = vpop.permute.xlu0 %777
    %779 = vrot.lane.b32.xlu0 %v764, 96
    %v780 = vpop.permute.xlu0 %779
    %781 = vrot.lane.b32.xlu0 %v766, 96
    %v782 = vpop.permute.xlu0 %781
    %783 = vrot.lane.b32.xlu0 %v768, 96
    %v784 = vpop.permute.xlu0 %783
    %785 = vrot.lane.b32.xlu0 %v770, 96
    %v786 = vpop.permute.xlu0 %785
    %v787 = vsel %vm183, %v752, 0
    %v789 = vsel %vm183, %v755, 0
    %v791 = vsel %vm183, %v760, 0
    %v793 = vsel %vm183, %v762, 0
    %v795 = vsel %vm183, %v764, 0
    %v797 = vsel %vm183, %v766, 0
    %v799 = vsel %vm183, %v768, 0
    %v801 = vsel %vm183, %v770, 0
    %v803 = vsel %vm183, %v772, 0
    %v805 = vsel %vm183, %v774, 0
    %v807 = vsel %vm183, %v776, 0
    %v809 = vsel %vm183, %v778, 0
    %v811 = vsel %vm183, %v780, 0
    %v813 = vsel %vm183, %v782, 0
    %v815 = vsel %vm183, %v784, 0
    %v817 = vsel %vm183, %v786, 0
    %819 = vmatpush.xpose.msra.mxu0 0.0
    %820 = vmatpush.xpose.msra.mxu0 0.0
    %821 = vmatpush.xpose.msra.mxu0 0.0
    %822 = vmatpush.xpose.msra.mxu0 0.0
    %823 = vmatpush.xpose.msra.mxu0 0.0
    %824 = vmatpush.xpose.msra.mxu0 0.0
    %825 = vmatpush.xpose.msra.mxu0 0.0
    %826 = vmatpush.xpose.msra.mxu0 0.0
    %827 = vmatpush.xpose.msra.mxu0 %v817
    %828 = vmatpush.xpose.msra.mxu0 %v815
    %829 = vmatpush.xpose.msra.mxu0 %v813
    %830 = vmatpush.xpose.msra.mxu0 %v811
    %831 = vmatpush.xpose.msra.mxu0 %v809
    %832 = vmatpush.xpose.msra.mxu0 %v807
    %833 = vmatpush.xpose.msra.mxu0 %v805
    %834 = vmatpush.xpose.msra.mxu0 %v803
    %835 = vmatmul.f32.gmra.mxu0 %v787
    %v836 = vpop.f32.mrf.mxu0
    %v837 = vadd.f32 %v105, %v836
    %838 = vmatmul.f32.gmra.mxu0 %v789
    %v839 = vpop.f32.mrf.mxu0
    %v840 = vadd.f32 %v106, %v839
    %841 = vmatmul.f32.gmra.mxu0 %v791
    %v842 = vpop.f32.mrf.mxu0
    %v843 = vadd.f32 %v107, %v842
    %844 = vmatmul.f32.gmra.mxu0 %v793
    %v845 = vpop.f32.mrf.mxu0
    %v846 = vadd.f32 %v108, %v845
    %847 = vmatmul.f32.gmra.mxu0 %v795
    %v848 = vpop.f32.mrf.mxu0
    %v849 = vadd.f32 %v109, %v848
    %850 = vmatmul.f32.gmra.mxu0 %v797
    %v851 = vpop.f32.mrf.mxu0
    %v852 = vadd.f32 %v110, %v851
    %853 = vmatmul.f32.gmra.mxu0 %v799
    %v854 = vpop.f32.mrf.mxu0
    %v855 = vadd.f32 %v111, %v854
    %856 = vmatmul.f32.gmra.mxu0 %v801
    %v857 = vpop.f32.mrf.mxu0
    %v858 = vadd.f32 %v112, %v857
    %859 = vdwg.mxu0
    %v860 = vsel %vm257, %v837, -inf
    %861 = vmax.xlane.f32.xlu0 %v860
    %v862 = vpop.xlane.xlu0 %861
    %v863 = vsel %vm257, %v840, -inf
    %864 = vmax.xlane.f32.xlu0 %v863
    %v865 = vpop.xlane.xlu0 %864
    %v866 = vsel %vm257, %v843, -inf
    %867 = vmax.xlane.f32.xlu0 %v866
    %v868 = vpop.xlane.xlu0 %867
    %v869 = vsel %vm257, %v846, -inf
    %870 = vmax.xlane.f32.xlu0 %v869
    %v871 = vpop.xlane.xlu0 %870
    %v872 = vsel %vm257, %v849, -inf
    %873 = vmax.xlane.f32.xlu0 %v872
    %v874 = vpop.xlane.xlu0 %873
    %v875 = vsel %vm257, %v852, -inf
    %876 = vmax.xlane.f32.xlu0 %v875
    %v877 = vpop.xlane.xlu0 %876
    %v878 = vsel %vm257, %v855, -inf
    %879 = vmax.xlane.f32.xlu0 %v878
    %v880 = vpop.xlane.xlu0 %879
    %v881 = vsel %vm257, %v858, -inf
    %882 = vmax.xlane.f32.xlu0 %v881
    %v883 = vpop.xlane.xlu0 %882
    %v884 = vsub.f32 %v837, %v862
    %v885 = vsub.f32 %v840, %v865
    %v886 = vsub.f32 %v843, %v868
    %v887 = vsub.f32 %v846, %v871
    %v888 = vsub.f32 %v849, %v874
    %v889 = vsub.f32 %v852, %v877
    %v890 = vsub.f32 %v855, %v880
    %v891 = vsub.f32 %v858, %v883
    %v892 = vmul.f32 %v884, 1.442695
    %v893 = vpow.pop %v892
    %v894 = vmul.f32 %v885, 1.442695
    %v895 = vpow.pop %v894
    %v896 = vmul.f32 %v886, 1.442695
    %v897 = vpow.pop %v896
    %v898 = vmul.f32 %v887, 1.442695
    %v899 = vpow.pop %v898
    %v900 = vmul.f32 %v888, 1.442695
    %v901 = vpow.pop %v900
    %v902 = vmul.f32 %v889, 1.442695
    %v903 = vpow.pop %v902
    %v904 = vmul.f32 %v890, 1.442695
    %v905 = vpow.pop %v904
    %v906 = vmul.f32 %v891, 1.442695
    %v907 = vpow.pop %v906
    %v908 = vsel %vm257, %v893, 0.0
    %909 = vadd.xlane.f32.xlu0 %v908
    %v910 = vpop.xlane.xlu0 %909
    %v911 = vsel %vm257, %v895, 0.0
    %912 = vadd.xlane.f32.xlu0 %v911
    %v913 = vpop.xlane.xlu0 %912
    %v914 = vsel %vm257, %v897, 0.0
    %915 = vadd.xlane.f32.xlu0 %v914
    %v916 = vpop.xlane.xlu0 %915
    %v917 = vsel %vm257, %v899, 0.0
    %918 = vadd.xlane.f32.xlu0 %v917
    %v919 = vpop.xlane.xlu0 %918
    %v920 = vsel %vm257, %v901, 0.0
    %921 = vadd.xlane.f32.xlu0 %v920
    %v922 = vpop.xlane.xlu0 %921
    %v923 = vsel %vm257, %v903, 0.0
    %924 = vadd.xlane.f32.xlu0 %v923
    %v925 = vpop.xlane.xlu0 %924
    %v926 = vsel %vm257, %v905, 0.0
    %927 = vadd.xlane.f32.xlu0 %v926
    %v928 = vpop.xlane.xlu0 %927
    %v929 = vsel %vm257, %v907, 0.0
    %930 = vadd.xlane.f32.xlu0 %v929
    %v931 = vpop.xlane.xlu0 %930
    %v932 = vrcp.pop %v910
    %v933 = vrcp.pop %v913
    %v934 = vrcp.pop %v916
    %v935 = vrcp.pop %v919
    %v936 = vrcp.pop %v922
    %v937 = vrcp.pop %v925
    %v938 = vrcp.pop %v928
    %v939 = vrcp.pop %v931
    %v940 = vmul.f32 %v893, %v932
    %v941 = vmul.f32 %v895, %v933
    %v942 = vmul.f32 %v897, %v934
    %v943 = vmul.f32 %v899, %v935
    %v944 = vmul.f32 %v901, %v936
    %v945 = vmul.f32 %v903, %v937
    %v946 = vmul.f32 %v905, %v938
    %v947 = vmul.f32 %v907, %v939
    %948 = vrot.lane.b32.xlu0 %v752, 64
    %v949 = vpop.permute.xlu0 %948
    %950 = vrot.lane.b32.xlu0 %v755, 64
    %v951 = vpop.permute.xlu0 %950
    %952 = vrot.lane.b32.xlu0 %v760, 64
    %v953 = vpop.permute.xlu0 %952
    %954 = vrot.lane.b32.xlu0 %v762, 64
    %v955 = vpop.permute.xlu0 %954
    %956 = vrot.lane.b32.xlu0 %v764, 64
    %v957 = vpop.permute.xlu0 %956
    %958 = vrot.lane.b32.xlu0 %v766, 64
    %v959 = vpop.permute.xlu0 %958
    %960 = vrot.lane.b32.xlu0 %v768, 64
    %v961 = vpop.permute.xlu0 %960
    %962 = vrot.lane.b32.xlu0 %v770, 64
    %v963 = vpop.permute.xlu0 %962
    %v973 = vsel %vm257, %v940, 0
    %v976 = vsel %vm257, %v941, 0
    %v979 = vsel %vm257, %v942, 0
    %v982 = vsel %vm257, %v943, 0
    %v985 = vsel %vm257, %v944, 0
    %v988 = vsel %vm257, %v945, 0
    %v991 = vsel %vm257, %v946, 0
    %v994 = vsel %vm257, %v947, 0
    %996 = vmatpush.msra.mxu0 0.0
    %997 = vmatpush.msra.mxu0 0.0
    %998 = vmatpush.msra.mxu0 0.0
    %999 = vmatpush.msra.mxu0 0.0
    %1000 = vmatpush.msra.mxu0 0.0
    %1001 = vmatpush.msra.mxu0 0.0
    %1002 = vmatpush.msra.mxu0 0.0
    %1003 = vmatpush.msra.mxu0 0.0
    %1004 = vmatpush.msra.mxu0 %v963
    %1005 = vmatpush.msra.mxu0 %v961
    %1006 = vmatpush.msra.mxu0 %v959
    %1007 = vmatpush.msra.mxu0 %v957
    %1008 = vmatpush.msra.mxu0 %v955
    %1009 = vmatpush.msra.mxu0 %v953
    %1010 = vmatpush.msra.mxu0 %v951
    %1011 = vmatpush.msra.mxu0 %v949
    %1012 = vmatmul.f32.gmra.mxu0 %v973
    %v1013 = vpop.f32.mrf.mxu0
    %v1014 = vadd.f32 0.0, %v1013
    %1015 = vmatmul.f32.gmra.mxu0 %v976
    %v1016 = vpop.f32.mrf.mxu0
    %v1017 = vadd.f32 0.0, %v1016
    %1018 = vmatmul.f32.gmra.mxu0 %v979
    %v1019 = vpop.f32.mrf.mxu0
    %v1020 = vadd.f32 0.0, %v1019
    %1021 = vmatmul.f32.gmra.mxu0 %v982
    %v1022 = vpop.f32.mrf.mxu0
    %v1023 = vadd.f32 0.0, %v1022
    %1024 = vmatmul.f32.gmra.mxu0 %v985
    %v1025 = vpop.f32.mrf.mxu0
    %v1026 = vadd.f32 0.0, %v1025
    %1027 = vmatmul.f32.gmra.mxu0 %v988
    %v1028 = vpop.f32.mrf.mxu0
    %v1029 = vadd.f32 0.0, %v1028
    %1030 = vmatmul.f32.gmra.mxu0 %v991
    %v1031 = vpop.f32.mrf.mxu0
    %v1032 = vadd.f32 0.0, %v1031
    %1033 = vmatmul.f32.gmra.mxu0 %v994
    %v1034 = vpop.f32.mrf.mxu0
    %v1035 = vadd.f32 0.0, %v1034
    %1036 = vdwg.mxu0
    %1039 = vrot.lane.b32.xlu0 %v1020, 8
    %v1040 = vpop.permute.xlu0 %1039
    %1041 = vrot.lane.b32.xlu0 %v1023, 8
    %v1042 = vpop.permute.xlu0 %1041
    %1047 = vrot.lane.b32.xlu0 %v1026, 16
    %v1048 = vpop.permute.xlu0 %1047
    %1049 = vrot.lane.b32.xlu0 %v1029, 16
    %v1050 = vpop.permute.xlu0 %1049
    %1055 = vrot.lane.b32.xlu0 %v1032, 24
    %v1056 = vpop.permute.xlu0 %1055
    %1057 = vrot.lane.b32.xlu0 %v1035, 24
    %v1058 = vpop.permute.xlu0 %1057
    %v1061 = vsel %vm183, %v1014, %v1040
    %v1062 = vsel %vm183, %v1017, %v1042
    %v1063 = vsel %vm461, %v1061, %v1048
    %v1064 = vsel %vm461, %v1062, %v1050
    %v1065 = vsel %vm464, %v1063, %v1056
    %v1066 = vsel %vm464, %v1064, %v1058
    %1071 = vrot.lane.b32.xlu0 %v719, 32
    %v1072 = vpop.permute.xlu0 %1071
    %1073 = vrot.lane.b32.xlu0 %v720, 32
    %v1074 = vpop.permute.xlu0 %1073
    %1075 = vrot.lane.b32.xlu0 %v721, 32
    %v1076 = vpop.permute.xlu0 %1075
    %1077 = vrot.lane.b32.xlu0 %v722, 32
    %v1078 = vpop.permute.xlu0 %1077
    %1083 = vrot.lane.b32.xlu0 %v726, 32
    %v1084 = vpop.permute.xlu0 %1083
    %v1087 = vsel %vm123, %v1065, 0
    %v1090 = vsel %vm123, %v1066, 0
    %1092 = vmatpush.msra.mxu0 0.0
    %1093 = vmatpush.msra.mxu0 0.0
    %1094 = vmatpush.msra.mxu0 0.0
    %1095 = vmatpush.msra.mxu0 0.0
    %1096 = vmatpush.msra.mxu0 0.0
    %1097 = vmatpush.msra.mxu0 0.0
    %1098 = vmatpush.msra.mxu0 0.0
    %1099 = vmatpush.msra.mxu0 0.0
    %1100 = vmatpush.msra.mxu0 0.0
    %1101 = vmatpush.msra.mxu0 0.0
    %1102 = vmatpush.msra.mxu0 0.0
    %1103 = vmatpush.msra.mxu0 0.0
    %1104 = vmatpush.msra.mxu0 %v1078
    %1105 = vmatpush.msra.mxu0 %v1076
    %1106 = vmatpush.msra.mxu0 %v1074
    %1107 = vmatpush.msra.mxu0 %v1072
    %1108 = vmatmul.f32.gmra.mxu0 %v1087
    %v1109 = vpop.f32.mrf.mxu0
    %v1110 = vadd.f32 %v1084, %v1109
    %1111 = vmatmul.f32.gmra.mxu0 %v1090
    %v1112 = vpop.f32.mrf.mxu0
    %v1113 = vadd.f32 %v1084, %v1112
    %1114 = vdwg.mxu0
    %v1115 = vadd.f32 %v716, %v1110
    %v1116 = vadd.f32 %v717, %v1113
    %s1117 = scalar_lea.vmem [#allocation5], 1
    %v1118 = vld [vmem:[%s1117] sm:$0x1]
    %s1119 = scalar_lea.vmem [#allocation7], 1
    %v1120 = vld [vmem:[%s1119] sm:$0x1]
    %v1121 = vsel %vm123, %v1115, 0.0
    %1122 = vadd.xlane.f32.xlu0 %v1121
    %v1123 = vpop.xlane.xlu0 %1122
    %v1124 = vsel %vm123, %v1116, 0.0
    %1125 = vadd.xlane.f32.xlu0 %v1124
    %v1126 = vpop.xlane.xlu0 %1125
    %v1127 = vmul.f32 %v1123, %v531
    %v1128 = vmul.f32 %v1126, %v531
    %v1129 = vsub.f32 %v1115, %v1127
    %v1130 = vsub.f32 %v1116, %v1128
    %v1131 = vmul.f32 %v1129, %v1129
    %v1132 = vmul.f32 %v1130, %v1130
    %v1133 = vsel %vm123, %v1131, 0.0
    %1134 = vadd.xlane.f32.xlu0 %v1133
    %v1135 = vpop.xlane.xlu0 %1134
    %v1136 = vsel %vm123, %v1132, 0.0
    %1137 = vadd.xlane.f32.xlu0 %v1136
    %v1138 = vpop.xlane.xlu0 %1137
    %v1139 = vmul.f32 %v1135, %v531
    %v1140 = vmul.f32 %v1138, %v531
    %v1141 = vadd.f32 %v1139, 1e-05
    %v1142 = vadd.f32 %v1140, 1e-05
    %v1143 = vrsqrt.pop %v1141
    %v1144 = vmul.f32 %v1143, %v1141
    %v1145 = vmul.f32 %v1144, %v1143
    %v1146 = vmul.f32 0.5, %v1145
    %v1147 = vsub.f32 1.5, %v1146
    %v1148 = vmul.f32 %v1143, %v1147
    %vm1149 = vweird.f32 %v1141
    %vm1150 = vweird.f32 %v1143
    %vm1151 = vmor %vm1149, %vm1150
    %v1152 = vsel %vm1151, %v1143, %v1148
    %v1153 = vrsqrt.pop %v1142
    %v1154 = vmul.f32 %v1153, %v1142
    %v1155 = vmul.f32 %v1154, %v1153
    %v1156 = vmul.f32 0.5, %v1155
    %v1157 = vsub.f32 1.5, %v1156
    %v1158 = vmul.f32 %v1153, %v1157
    %vm1159 = vweird.f32 %v1142
    %vm1160 = vweird.f32 %v1153
    %vm1161 = vmor %vm1159, %vm1160
    %v1162 = vsel %vm1161, %v1153, %v1158
    %v1163 = vmul.f32 %v1129, %v1152
    %v1164 = vmul.f32 %v1130, %v1162
    %v1166 = vperm.slane %v1118, 0
    %v1168 = vmul.f32 %v1163, %v1166
    %v1169 = vmul.f32 %v1164, %v1166
    %v1171 = vperm.slane %v1120, 0
    %v1173 = vadd.f32 %v1168, %v1171
    %v1174 = vadd.f32 %v1169, %v1171
    %s1175 = scalar_lea.vmem %s6, 32
    %v1176 = vld [vmem:[%s1175] sm:$0xff]
    %v1177 = vld [vmem:[%s1175 + $0x8] sm:$0xff]
    %v1178 = vld [vmem:[%s1175 + $0x10] sm:$0xff]
    %v1179 = vld [vmem:[%s1175 + $0x18] sm:$0xff]
    %s1180 = scalar_lea.vmem %s7, 1
    %v1181 = vld [vmem:[%s1180] sm:$0x1]
    %v1183 = vperm.slane %v1181, 0
    %v1186 = vsel %vm123, %v1173, 0
    %v1189 = vsel %vm123, %v1174, 0
    %1191 = vmatpush.msra.mxu0 0.0
    %1192 = vmatpush.msra.mxu0 0.0
    %1193 = vmatpush.msra.mxu0 0.0
    %1194 = vmatpush.msra.mxu0 0.0
    %1195 = vmatpush.msra.mxu0 0.0
    %1196 = vmatpush.msra.mxu0 0.0
    %1197 = vmatpush.msra.mxu0 0.0
    %1198 = vmatpush.msra.mxu0 0.0
    %1199 = vmatpush.msra.mxu0 0.0
    %1200 = vmatpush.msra.mxu0 0.0
    %1201 = vmatpush.msra.mxu0 0.0
    %1202 = vmatpush.msra.mxu0 0.0
    %1203 = vmatpush.msra.mxu0 %v1179
    %1204 = vmatpush.msra.mxu0 %v1178
    %1205 = vmatpush.msra.mxu0 %v1177
    %1206 = vmatpush.msra.mxu0 %v1176
    %1207 = vmatmul.f32.gmra.mxu0 %v1186
    %v1208 = vpop.f32.mrf.mxu0
    %v1209 = vadd.f32 %v1183, %v1208
    %1210 = vmatmul.f32.gmra.mxu0 %v1189
    %v1211 = vpop.f32.mrf.mxu0
    %v1212 = vadd.f32 %v1183, %v1211
    %1213 = vdwg.mxu0
    %v1214 = vmax.f32 %v1209, 0.0
    %v1215 = vmax.f32 %v1212, 0.0
    %s1216 = scalar_lea.vmem %s8, 64
    %v1217 = vld [vmem:[%s1216] sm:$0xff]
    %v1218 = vld [vmem:[%s1216 + $0x8] sm:$0xff]
    %v1219 = vld [vmem:[%s1216 + $0x10] sm:$0xff]
    %v1220 = vld [vmem:[%s1216 + $0x18] sm:$0xff]
    %v1221 = vld [vmem:[%s1216 + $0x20] sm:$0xff]
    %v1222 = vld [vmem:[%s1216 + $0x28] sm:$0xff]
    %v1223 = vld [vmem:[%s1216 + $0x30] sm:$0xff]
    %v1224 = vld [vmem:[%s1216 + $0x38] sm:$0xff]
    %s1225 = scalar_lea.vmem %s9, 1
    %v1226 = vld [vmem:[%s1225] sm:$0x1]
    %v1228 = vperm.slane %v1226, 0
    %v1231 = vsel %vm257, %v1214, 0
    %v1234 = vsel %vm257, %v1215, 0
    %1236 = vmatpush.msra.mxu0 0.0
    %1237 = vmatpush.msra.mxu0 0.0
    %1238 = vmatpush.msra.mxu0 0.0
    %1239 = vmatpush.msra.mxu0 0.0
    %1240 = vmatpush.msra.mxu0 0.0
    %1241 = vmatpush.msra.mxu0 0.0
    %1242 = vmatpush.msra.mxu0 0.0
    %1243 = vmatpush.msra.mxu0 0.0
    %1244 = vmatpush.msra.mxu0 %v1224
    %1245 = vmatpush.msra.mxu0 %v1223
    %1246 = vmatpush.msra.mxu0 %v1222
    %1247 = vmatpush.msra.mxu0 %v1221
    %1248 = vmatpush.msra.mxu0 %v1220
    %1249 = vmatpush.msra.mxu0 %v1219
    %1250 = vmatpush.msra.mxu0 %v1218
    %1251 = vmatpush.msra.mxu0 %v1217
    %1252 = vmatmul.f32.gmra.mxu0 %v1231
    %v1253 = vpop.f32.mrf.mxu0
    %v1254 = vadd.f32 %v1228, %v1253
    %1255 = vmatmul.f32.gmra.mxu0 %v1234
    %v1256 = vpop.f32.mrf.mxu0
    %v1257 = vadd.f32 %v1228, %v1256
    %1258 = vdwg.mxu0
    %v1259 = vadd.f32 %v1173, %v1254
    %v1260 = vadd.f32 %v1174, %v1257
    %s1261 = scalar_lea.vmem %s10, 1
    %v1262 = vld [vmem:[%s1261] sm:$0x1]
    %s1263 = scalar_lea.vmem [#allocation8], 1
    %v1264 = vld [vmem:[%s1263] sm:$0x1]
    %v1265 = vsel %vm123, %v1259, 0.0
    %1266 = vadd.xlane.f32.xlu0 %v1265
    %v1267 = vpop.xlane.xlu0 %1266
    %v1268 = vsel %vm123, %v1260, 0.0
    %1269 = vadd.xlane.f32.xlu0 %v1268
    %v1270 = vpop.xlane.xlu0 %1269
    %v1271 = vmul.f32 %v1267, %v531
    %v1272 = vmul.f32 %v1270, %v531
    %v1273 = vsub.f32 %v1259, %v1271
    %v1274 = vsub.f32 %v1260, %v1272
    %v1275 = vmul.f32 %v1273, %v1273
    %v1276 = vmul.f32 %v1274, %v1274
    %v1277 = vsel %vm123, %v1275, 0.0
    %1278 = vadd.xlane.f32.xlu0 %v1277
    %v1279 = vpop.xlane.xlu0 %1278
    %v1280 = vsel %vm123, %v1276, 0.0
    %1281 = vadd.xlane.f32.xlu0 %v1280
    %v1282 = vpop.xlane.xlu0 %1281
    %v1283 = vmul.f32 %v1279, %v531
    %v1284 = vmul.f32 %v1282, %v531
    %v1285 = vadd.f32 %v1283, 1e-05
    %v1286 = vadd.f32 %v1284, 1e-05
    %v1287 = vrsqrt.pop %v1285
    %v1288 = vmul.f32 %v1287, %v1285
    %v1289 = vmul.f32 %v1288, %v1287
    %v1290 = vmul.f32 0.5, %v1289
    %v1291 = vsub.f32 1.5, %v1290
    %v1292 = vmul.f32 %v1287, %v1291
    %vm1293 = vweird.f32 %v1285
    %vm1294 = vweird.f32 %v1287
    %vm1295 = vmor %vm1293, %vm1294
    %v1296 = vsel %vm1295, %v1287, %v1292
    %v1297 = vrsqrt.pop %v1286
    %v1298 = vmul.f32 %v1297, %v1286
    %v1299 = vmul.f32 %v1298, %v1297
    %v1300 = vmul.f32 0.5, %v1299
    %v1301 = vsub.f32 1.5, %v1300
    %v1302 = vmul.f32 %v1297, %v1301
    %vm1303 = vweird.f32 %v1286
    %vm1304 = vweird.f32 %v1297
    %vm1305 = vmor %vm1303, %vm1304
    %v1306 = vsel %vm1305, %v1297, %v1302
    %v1307 = vmul.f32 %v1273, %v1296
    %v1308 = vmul.f32 %v1274, %v1306
    %v1310 = vperm.slane %v1262, 0
    %v1312 = vmul.f32 %v1307, %v1310
    %v1313 = vmul.f32 %v1308, %v1310
    %v1315 = vperm.slane %v1264, 0
    %v1317 = vadd.f32 %v1312, %v1315
    %v1318 = vadd.f32 %v1313, %v1315
    %1319 = vst.msk [vmem:[#allocation10] sm:$0xff] %vm123, %v1317
    %1320 = vst.msk [vmem:[#allocation10 + $0x8] sm:$0xff] %vm123, %v1318
    // Predicated region
    $region66: #{tpu_custom_call.1} parent=1 // pred_check
      _
    $region67: #{tpu_custom_call.1} parent=1 // pred_check_branch
      %1322 = sbr.rel (0) target = $region69
    $region68: #{tpu_custom_call.1} parent=1 // pred_region
      %1324 = vsyncadd [#allocation4], 0
      %s1325 = sshll.u32 [#allocation10], 4
      %s1326 = int_to_ptr.vmem [resolvable:$true] %s1325
      %s1327 = sshll.u32 %s12, 4
      %s1328 = int_to_ptr.hbm [resolvable:$true] %s1327
      %1333 = dma.vmem_to_hbm [thread:$0]  %s1326, 256, %s1328, [#allocation4], 128, 128, 8
    $region69: #{tpu_custom_call.1} parent=1 // pred_fallthru
      _
    // Predicated region
    $region70: #{tpu_custom_call.1} parent=1 // pred_check
      _
    $region71: #{tpu_custom_call.1} parent=1 // pred_check_branch
      %1335 = sbr.rel (0) target = $region73
    $region72: #{tpu_custom_call.1} parent=1 // pred_region
      %1337 = dma.done [#allocation4], 256
    $region73: #{tpu_custom_call.1} parent=1 // pred_fallthru
      _
    %1338 = vsyncpa [#allocation3], 1
    %1339 = vsyncpa [#allocation6], 1
    %1340 = vsyncpa [#allocation9], 1
    %1341 = vsyncpa [#allocation4], 1

</llo_original>
